<compile_context>
chip_gen: v5e
topology: v5e:2x2
jax: 0.10.0
libtpu: 0.0.40
codegen_flags: <defaults>
</compile_context>

<pallas_src>
import jax
import jax.numpy as jnp
import numpy as np
from jax.experimental import pallas as pl
from jax.experimental.pallas import tpu as pltpu

# ----------------------------- hyper-parameters -----------------------------
VOCAB = 50
EMB = 16            # emb_size
HID = 16            # hidden_size per direction
NLAYERS = 1         # n_layers (fused kernel implemented for 1 layer)
NPROBES = 4         # n_probes
LABELS = 8          # labels_num
PAD_IDX = 0
B, L = 2, 16
D = 2 * HID                                  # bidirectional feature dim
G = 8 * HID                                  # packed bidirectional gate width = 128
VOCAB_PAD = ((VOCAB + 127) // 128) * 128     # pad one-hot width to full 128 lanes


# ------------------------------ fused kernel ---------------------------------
def _fused_kernel(ids_ref, emb_ref, wih_ref, bg_ref, whh_ref,
                  wattn_ref, wcat_ref, bout_ref, out_ref):
    R = L * B
    H2 = 2 * HID

    # ---- embedding via one-hot matmul (rows are time-major: r = t*B + b) ----
    ids = ids_ref[...]                                                    # [R, 1] int32
    vocab_iota = jax.lax.broadcasted_iota(jnp.int32, (R, VOCAB_PAD), 1)
    onehot = (vocab_iota == ids).astype(jnp.float32)                      # [R, Vp]
    x = jnp.dot(onehot, emb_ref[...], preferred_element_type=jnp.float32)  # [R, EMB]

    # ---- input projection to packed bidirectional gates (both dirs at once) ----
    xp = jnp.dot(x, wih_ref[...], preferred_element_type=jnp.float32) + bg_ref[...]   # [R, G]
    m_all = (ids != PAD_IDX).astype(jnp.float32)                          # [R, 1]

    # ---- lane masks / activation constants (hoisted, h-independent) ----
    gate_lane = jax.lax.broadcasted_iota(jnp.int32, (1, G), 1)
    is_fwd_gate = (gate_lane % H2) < HID                  # fwd-direction lanes per gate block
    is_g_gate = (gate_lane >= 4 * HID) & (gate_lane < 6 * HID)            # tanh (g) block
    state_lane = jax.lax.broadcasted_iota(jnp.int32, (1, H2), 1)
    is_fwd_state = state_lane < HID
    # single-tanh activation: sigmoid(x) = 0.5 + 0.5*tanh(0.5*x); g lanes: tanh(x)
    scl = jnp.where(is_g_gate, 1.0, 0.5)                                  # [1, G]
    off = jnp.where(is_g_gate, 0.0, 0.5)                                  # [1, G]

    # ---- time-reversed copies (static slices, built once off the critical path) ----
    rev_idx = [L - 1 - t for t in range(L)]
    xp_rev = jnp.concatenate([xp[r * B:(r + 1) * B, :] for r in rev_idx], axis=0)    # [R, G]
    m_rev = jnp.concatenate([m_all[r * B:(r + 1) * B, :] for r in rev_idx], axis=0)  # [R, 1]
    gx_all = jnp.where(is_fwd_gate, xp, xp_rev)                           # [R, G]
    valid_all = jnp.where(is_fwd_state, m_all, m_rev) > 0.0               # [R, 2H]

    whh = whh_ref[...]                                                    # [2H, G] block-diag packed
    h = jnp.zeros((B, H2), jnp.float32)                                   # [h_fwd | h_bwd]
    c = jnp.zeros((B, H2), jnp.float32)

    fwd_outs = [None] * L     # fwd output at time t, [B, HID]
    bwd_outs = [None] * L     # bwd output at time t, [B, HID]

    # Fully-unrolled recurrence: step s runs fwd time s and bwd time L-1-s in
    # the same 128-lane packed cell.  Only static slices + MXU dot + cell math.
    for s in range(L):
        gx = gx_all[s * B:(s + 1) * B, :]                                 # [B, G]
        gates = gx + jnp.dot(h, whh, preferred_element_type=jnp.float32)  # [B, G]
        act = off + scl * jnp.tanh(scl * gates)                           # one tanh for all gates
        i_g = act[:, 0:H2]                    # [i_f | i_b]
        f_g = act[:, H2:2 * H2]               # [f_f | f_b]
        g_g = act[:, 2 * H2:3 * H2]           # [g_f | g_b]
        o_g = act[:, 3 * H2:4 * H2]           # [o_f | o_b]
        c_new = f_g * c + i_g * g_g
        h_new = o_g * jnp.tanh(c_new)

        valid = valid_all[s * B:(s + 1) * B, :]                           # [B, 2H]
        c = jnp.where(valid, c_new, c)
        h = jnp.where(valid, h_new, h)
        h_out = jnp.where(valid, h_new, 0.0)

        fwd_outs[s] = h_out[:, 0:HID]
        bwd_outs[L - 1 - s] = h_out[:, HID:H2]

    # ---- assemble time-major birnn outputs [R, D] from register-resident values ----
    hs = jnp.concatenate([jnp.concatenate(fwd_outs, axis=0),
                          jnp.concatenate(bwd_outs, axis=0)], axis=1)     # [R, D]

    # ---- MeSH probes: full-batch masked attention (no per-batch loop) ----
    scores = jnp.dot(hs, wattn_ref[...], preferred_element_type=jnp.float32)   # [R, P]
    # finite fill instead of -inf: all-padded rows stay NaN-free (documented divergence)
    scores = jnp.where(m_all > 0.0, scores, -1e30)
    scores = scores - jnp.max(scores, axis=0, keepdims=True)   # global shift: softmax-invariant
    e = jnp.exp(scores)                                        # masked entries underflow to 0
    # per-batch denominator, broadcast back to rows, via one selector matmul
    ri = jax.lax.broadcasted_iota(jnp.int32, (R, R), 0)
    rj = jax.lax.broadcasted_iota(jnp.int32, (R, R), 1)
    same_b = ((ri % B) == (rj % B)).astype(jnp.float32)                   # [R, R]
    denom = jnp.dot(same_b, e, preferred_element_type=jnp.float32)        # [R, P]
    attn = e / denom                                                      # exact division

    # ---- classifier: logits[b,o] = sum_{r in batch b} sum_p attn[r,p]*(hs[r,:] @ Wp)[o]
    y = jnp.dot(hs, wcat_ref[...], preferred_element_type=jnp.float32)    # [R, P*LABELS]
    zsum = jnp.zeros((R, LABELS), jnp.float32)
    for p in range(NPROBES):
        zsum = zsum + attn[:, p:p + 1] * y[:, p * LABELS:(p + 1) * LABELS]
    # sum rows per batch with one [B, R] selector matmul
    bi = jax.lax.broadcasted_iota(jnp.int32, (B, R), 0)
    bj = jax.lax.broadcasted_iota(jnp.int32, (B, R), 1)
    sel = (bi == (bj % B)).astype(jnp.float32)                            # [B, R]
    out_ref[...] = (jnp.dot(sel, zsum, preferred_element_type=jnp.float32)
                    + bout_ref[...]).astype(out_ref.dtype)


def forward_pallas(ids, packed):
    # tiny int glue only: time-major ids for the recurrence
    ids_tm = jnp.transpose(ids).reshape(L * B, 1).astype(jnp.int32)

    def vspec():
        return pl.BlockSpec(memory_space=pltpu.MemorySpace.VMEM)

    return pl.pallas_call(
        _fused_kernel,
        out_shape=jax.ShapeDtypeStruct((B, LABELS), jnp.float32),
        in_specs=[vspec() for _ in range(8)],
        out_specs=vspec(),
    )(ids_tm, packed["emb"], packed["wih"], packed["bg"], packed["whh"],
      packed["wattn"], packed["wcat"], packed["bout"])


# ------------------------------ parameters -----------------------------------
def init_params(key):
    ks = jax.random.split(key, 16)
    params = {}
    emb = jax.random.normal(ks[0], (VOCAB, EMB), jnp.float32) * 0.1
    emb = emb.at[PAD_IDX].set(0.0)                       # padding_idx=0
    params["emb"] = emb

    layers = []
    in_dim = EMB
    kidx = 1
    for _ in range(NLAYERS):
        layer = {}
        for d in ("fwd", "bwd"):
            k1, k2, k3, k4 = jax.random.split(ks[kidx], 4)
            kidx += 1
            s = 1.0 / np.sqrt(HID)
            layer[d] = dict(
                w_ih_t=jax.random.uniform(k1, (in_dim, 4 * HID), jnp.float32, -s, s),
                w_hh_t=jax.random.uniform(k2, (HID, 4 * HID), jnp.float32, -s, s),
                b_ih=jax.random.uniform(k3, (4 * HID,), jnp.float32, -s, s),
                b_hh=jax.random.uniform(k4, (4 * HID,), jnp.float32, -s, s),
            )
        layers.append(layer)
        in_dim = 2 * HID
    params["lstm"] = layers

    # Probe.self_attn: Linear(D, n_probes, bias=False), xavier_uniform
    bnd = np.sqrt(6.0 / (D + NPROBES))
    params["w_attn_t"] = jax.random.uniform(ks[12], (D, NPROBES), jnp.float32, -bnd, bnd)
    # PlainC.out_mesh_dstrbtn: Linear(D * n_probes, labels_num), xavier_uniform
    bnd2 = np.sqrt(6.0 / (D * NPROBES + LABELS))
    params["w_out_t"] = jax.random.uniform(ks[13], (D * NPROBES, LABELS), jnp.float32, -bnd2, bnd2)
    params["b_out"] = jnp.zeros((1, LABELS), jnp.float32)
    return params


def pack_params(params):
    """Repack weights for the fused kernel: gate-major, direction-interleaved lanes."""
    assert len(params["lstm"]) == 1, "fused kernel implemented for n_layers == 1"
    fwd = params["lstm"][0]["fwd"]
    bwd = params["lstm"][0]["bwd"]

    def gcols(w_t, g):           # gate block g (i,f,g,o) of a transposed weight [*, 4H]
        return w_t[:, g * HID:(g + 1) * HID]

    # W_ih packed: [EMB, 8H], columns [i_f i_b f_f f_b g_f g_b o_f o_b]
    wih = jnp.concatenate(
        [blk for g in range(4) for blk in (gcols(fwd["w_ih_t"], g), gcols(bwd["w_ih_t"], g))],
        axis=1)
    # combined biases, same column order
    b_f = fwd["b_ih"] + fwd["b_hh"]
    b_b = bwd["b_ih"] + bwd["b_hh"]
    bg = jnp.concatenate(
        [blk for g in range(4) for blk in (b_f[g * HID:(g + 1) * HID], b_b[g * HID:(g + 1) * HID])]
    )[None, :]
    # block-diagonal W_hh packed: [2H, 8H]; rows 0:H = fwd hidden, H:2H = bwd hidden
    z = jnp.zeros((HID, HID), jnp.float32)
    whh = jnp.concatenate(
        [blk for g in range(4) for blk in (
            jnp.concatenate([gcols(fwd["w_hh_t"], g), z], axis=0),
            jnp.concatenate([z, gcols(bwd["w_hh_t"], g)], axis=0))],
        axis=1)
    # embedding table padded to 128 vocab rows so the one-hot fills full lanes
    emb = jnp.zeros((VOCAB_PAD, EMB), jnp.float32).at[:VOCAB].set(params["emb"])
    # classifier weights regrouped probe-major along lanes: wcat[:, p*LABELS+o] = wout[p*D:(p+1)*D, o]
    wout_t = params["w_out_t"]                         # [P*D, LABELS]
    wcat = jnp.concatenate([wout_t[p * D:(p + 1) * D, :] for p in range(NPROBES)], axis=1)
    return dict(emb=emb, wih=wih, bg=bg, whh=whh,
                wattn=params["w_attn_t"], wcat=wcat, bout=params["b_out"])


# ------------------------- pure-JAX reference forward -------------------------
def forward_ref(ids, params):
    x = jnp.take(params["emb"], ids, axis=0)
    mask_f = (ids != PAD_IDX).astype(jnp.float32)
    h = x
    for layer in params["lstm"]:
        outs = []
        for d in ("fwd", "bwd"):
            p = layer[d]
            xp = h @ p["w_ih_t"] + p["b_ih"] + p["b_hh"]     # [B, L, 4H]
            m = mask_f
            if d == "bwd":
                xp = xp[:, ::-1]
                m = m[:, ::-1]

            def step(carry, inp, p=p):
                hprev, cprev = carry
                xt, mt = inp
                gates = xt + hprev @ p["w_hh_t"]
                i = jax.nn.sigmoid(gates[:, :HID])
                f = jax.nn.sigmoid(gates[:, HID:2 * HID])
                g = jnp.tanh(gates[:, 2 * HID:3 * HID])
                o = jax.nn.sigmoid(gates[:, 3 * HID:])
                c_new = f * cprev + i * g
                h_new = o * jnp.tanh(c_new)
                v = mt[:, None] > 0
                return (jnp.where(v, h_new, hprev), jnp.where(v, c_new, cprev)), \
                       jnp.where(v, h_new, 0.0)

            init = (jnp.zeros((ids.shape[0], HID), jnp.float32),
                    jnp.zeros((ids.shape[0], HID), jnp.float32))
            _, hs = jax.lax.scan(step, init,
                                 (jnp.transpose(xp, (1, 0, 2)), jnp.transpose(m, (1, 0))))
            hs = jnp.transpose(hs, (1, 0, 2))
            if d == "bwd":
                hs = hs[:, ::-1]
            outs.append(hs)
        h = jnp.concatenate(outs, axis=-1)
    scores = jnp.einsum("bld,dp->bpl", h, params["w_attn_t"])
    scores = jnp.where(mask_f[:, None, :] > 0, scores, -jnp.inf)
    attn = jax.nn.softmax(scores, axis=-1)
    ctx = jnp.einsum("bpl,bld->bpd", attn, h).reshape(ids.shape[0], -1)
    return ctx @ params["w_out_t"] + params["b_out"]


# ---------------------------------- main --------------------------------------
if __name__ == "__main__":
    params = init_params(jax.random.PRNGKey(0))
    packed = pack_params(params)

    ids = jax.random.randint(jax.random.PRNGKey(1), (B, L), 1, VOCAB, dtype=jnp.int32)
    ids = ids.at[1, 12:].set(PAD_IDX)        # trailing padding for sequence 1

    logits = jax.jit(forward_pallas)(ids, packed)
    jax.block_until_ready(logits)
    assert logits.shape == (B, LABELS)

    ref = forward_ref(ids, params)
    np.testing.assert_allclose(np.asarray(logits), np.asarray(ref), rtol=2e-3, atol=2e-3)
    # TODO(synk): TreeNet class definition is not provided in the reference code;
    # raw logits are returned unchanged.
    print("KERNEL_OK")
</pallas_src>

<mosaic_0001>
module attributes {stable_mosaic.version = 11 : i64} {
  func.func @_fused_kernel(%arg0: memref<32x1xi32, #tpu.memory_space<vmem>>, %arg1: memref<128x16xf32, #tpu.memory_space<vmem>>, %arg2: memref<16x128xf32, #tpu.memory_space<vmem>>, %arg3: memref<1x128xf32, #tpu.memory_space<vmem>>, %arg4: memref<32x128xf32, #tpu.memory_space<vmem>>, %arg5: memref<32x4xf32, #tpu.memory_space<vmem>>, %arg6: memref<32x32xf32, #tpu.memory_space<vmem>>, %arg7: memref<1x8xf32, #tpu.memory_space<vmem>>, %arg8: memref<2x8xf32, #tpu.memory_space<vmem>>) attributes {dimension_semantics = [], scalar_prefetch = 0 : i64, scratch_operands = 0 : i64, tpu.core_type = #tpu.core_type<tc>} {
    %c0 = arith.constant 0 : index
    %c0_0 = arith.constant 0 : index
    %0 = vector.load %arg0[%c0, %c0_0] : memref<32x1xi32, #tpu.memory_space<vmem>>, vector<32x1xi32>
    %1 = tpu.iota {dimensions = array<i32: 1>} : vector<32x128xi32>
    %2 = vector.broadcast %0 : vector<32x1xi32> to vector<32x128xi32>
    %3 = arith.cmpi eq, %1, %2 : vector<32x128xi32>
    %4 = arith.extui %3 : vector<32x128xi1> to vector<32x128xi32>
    %5 = arith.sitofp %4 : vector<32x128xi32> to vector<32x128xf32>
    %c0_1 = arith.constant 0 : index
    %c0_2 = arith.constant 0 : index
    %6 = vector.load %arg1[%c0_1, %c0_2] : memref<128x16xf32, #tpu.memory_space<vmem>>, vector<128x16xf32>
    %cst = arith.constant dense<0.000000e+00> : vector<32x16xf32>
    %7 = tpu.matmul %5, %6, %cst {dimension_numbers = #tpu.dot_dimension_numbers<[1], [0], [0], [1], [0, 0, 1, 1], [], []>} : vector<32x128xf32>, vector<128x16xf32>, vector<32x16xf32> -> vector<32x16xf32>
    %c0_3 = arith.constant 0 : index
    %c0_4 = arith.constant 0 : index
    %8 = vector.load %arg2[%c0_3, %c0_4] : memref<16x128xf32, #tpu.memory_space<vmem>>, vector<16x128xf32>
    %cst_5 = arith.constant dense<0.000000e+00> : vector<32x128xf32>
    %9 = tpu.matmul %7, %8, %cst_5 {dimension_numbers = #tpu.dot_dimension_numbers<[1], [0], [0], [1], [0, 0, 1, 1], [], []>} : vector<32x16xf32>, vector<16x128xf32>, vector<32x128xf32> -> vector<32x128xf32>
    %c0_6 = arith.constant 0 : index
    %c0_7 = arith.constant 0 : index
    %10 = vector.load %arg3[%c0_6, %c0_7] : memref<1x128xf32, #tpu.memory_space<vmem>>, vector<1x128xf32>
    %11 = vector.broadcast %10 : vector<1x128xf32> to vector<32x128xf32>
    %12 = arith.addf %9, %11 : vector<32x128xf32>
    %c0_i32 = arith.constant 0 : i32
    %13 = vector.broadcast %c0_i32 : i32 to vector<32x1xi32>
    %14 = arith.cmpi ne, %0, %13 : vector<32x1xi32>
    %15 = arith.extui %14 : vector<32x1xi1> to vector<32x1xi32>
    %16 = arith.sitofp %15 : vector<32x1xi32> to vector<32x1xf32>
    %17 = tpu.iota {dimensions = array<i32: 1>} : vector<1x128xi32>
    %c32_i32 = arith.constant 32 : i32
    %c0_i32_8 = arith.constant 0 : i32
    %18 = arith.cmpi eq, %c32_i32, %c0_i32_8 : i32
    %c1_i32 = arith.constant 1 : i32
    %19 = arith.select %18, %c1_i32, %c32_i32 : i32
    %20 = vector.broadcast %19 : i32 to vector<1x128xi32>
    %21 = arith.remsi %17, %20 : vector<1x128xi32>
    %c0_i32_9 = arith.constant 0 : i32
    %22 = vector.broadcast %c0_i32_9 : i32 to vector<1x128xi32>
    %23 = arith.cmpi ne, %21, %22 : vector<1x128xi32>
    %c0_i32_10 = arith.constant 0 : i32
    %24 = vector.broadcast %c0_i32_10 : i32 to vector<1x128xi32>
    %25 = arith.cmpi slt, %21, %24 : vector<1x128xi32>
    %c0_i32_11 = arith.constant 0 : i32
    %26 = arith.cmpi slt, %19, %c0_i32_11 : i32
    %27 = vector.broadcast %26 : i1 to vector<1x128xi1>
    %28 = vector.broadcast %27 : vector<1x128xi1> to vector<1x128xi1>
    %29 = arith.xori %25, %28 : vector<1x128xi1>
    %30 = arith.andi %29, %23 : vector<1x128xi1>
    %31 = vector.broadcast %19 : i32 to vector<1x128xi32>
    %32 = arith.addi %21, %31 : vector<1x128xi32>
    %33 = arith.select %30, %32, %21 : vector<1x128xi1>, vector<1x128xi32>
    %c16_i32 = arith.constant 16 : i32
    %34 = vector.broadcast %c16_i32 : i32 to vector<1x128xi32>
    %35 = arith.cmpi slt, %33, %34 : vector<1x128xi32>
    %c64_i32 = arith.constant 64 : i32
    %36 = vector.broadcast %c64_i32 : i32 to vector<1x128xi32>
    %37 = arith.cmpi sge, %17, %36 : vector<1x128xi32>
    %c96_i32 = arith.constant 96 : i32
    %38 = vector.broadcast %c96_i32 : i32 to vector<1x128xi32>
    %39 = arith.cmpi slt, %17, %38 : vector<1x128xi32>
    %40 = arith.andi %37, %39 : vector<1x128xi1>
    %41 = tpu.iota {dimensions = array<i32: 1>} : vector<1x32xi32>
    %c16_i32_12 = arith.constant 16 : i32
    %42 = vector.broadcast %c16_i32_12 : i32 to vector<1x32xi32>
    %43 = arith.cmpi slt, %41, %42 : vector<1x32xi32>
    %cst_13 = arith.constant 1.000000e+00 : f32
    %cst_14 = arith.constant 5.000000e-01 : f32
    %44 = vector.broadcast %cst_13 : f32 to vector<1x128xf32>
    %45 = vector.broadcast %cst_14 : f32 to vector<1x128xf32>
    %46 = arith.select %40, %44, %45 : vector<1x128xi1>, vector<1x128xf32>
    %cst_15 = arith.constant 0.000000e+00 : f32
    %cst_16 = arith.constant 5.000000e-01 : f32
    %47 = vector.broadcast %cst_15 : f32 to vector<1x128xf32>
    %48 = vector.broadcast %cst_16 : f32 to vector<1x128xf32>
    %49 = arith.select %40, %47, %48 : vector<1x128xi1>, vector<1x128xf32>
    %50 = vector.extract_strided_slice %12 {offsets = [30, 0], sizes = [2, 128], strides = [1, 1]} : vector<32x128xf32> to vector<2x128xf32>
    %51 = vector.extract_strided_slice %12 {offsets = [28, 0], sizes = [2, 128], strides = [1, 1]} : vector<32x128xf32> to vector<2x128xf32>
    %52 = vector.extract_strided_slice %12 {offsets = [26, 0], sizes = [2, 128], strides = [1, 1]} : vector<32x128xf32> to vector<2x128xf32>
    %53 = vector.extract_strided_slice %12 {offsets = [24, 0], sizes = [2, 128], strides = [1, 1]} : vector<32x128xf32> to vector<2x128xf32>
    %54 = vector.extract_strided_slice %12 {offsets = [22, 0], sizes = [2, 128], strides = [1, 1]} : vector<32x128xf32> to vector<2x128xf32>
    %55 = vector.extract_strided_slice %12 {offsets = [20, 0], sizes = [2, 128], strides = [1, 1]} : vector<32x128xf32> to vector<2x128xf32>
    %56 = vector.extract_strided_slice %12 {offsets = [18, 0], sizes = [2, 128], strides = [1, 1]} : vector<32x128xf32> to vector<2x128xf32>
    %57 = vector.extract_strided_slice %12 {offsets = [16, 0], sizes = [2, 128], strides = [1, 1]} : vector<32x128xf32> to vector<2x128xf32>
    %58 = vector.extract_strided_slice %12 {offsets = [14, 0], sizes = [2, 128], strides = [1, 1]} : vector<32x128xf32> to vector<2x128xf32>
    %59 = vector.extract_strided_slice %12 {offsets = [12, 0], sizes = [2, 128], strides = [1, 1]} : vector<32x128xf32> to vector<2x128xf32>
    %60 = vector.extract_strided_slice %12 {offsets = [10, 0], sizes = [2, 128], strides = [1, 1]} : vector<32x128xf32> to vector<2x128xf32>
    %61 = vector.extract_strided_slice %12 {offsets = [8, 0], sizes = [2, 128], strides = [1, 1]} : vector<32x128xf32> to vector<2x128xf32>
    %62 = vector.extract_strided_slice %12 {offsets = [6, 0], sizes = [2, 128], strides = [1, 1]} : vector<32x128xf32> to vector<2x128xf32>
    %63 = vector.extract_strided_slice %12 {offsets = [4, 0], sizes = [2, 128], strides = [1, 1]} : vector<32x128xf32> to vector<2x128xf32>
    %64 = vector.extract_strided_slice %12 {offsets = [2, 0], sizes = [2, 128], strides = [1, 1]} : vector<32x128xf32> to vector<2x128xf32>
    %65 = vector.extract_strided_slice %12 {offsets = [0, 0], sizes = [2, 128], strides = [1, 1]} : vector<32x128xf32> to vector<2x128xf32>
    %66 = tpu.concatenate %50, %51, %52, %53, %54, %55, %56, %57, %58, %59, %60, %61, %62, %63, %64, %65 in 0 : vector<2x128xf32>, vector<2x128xf32>, vector<2x128xf32>, vector<2x128xf32>, vector<2x128xf32>, vector<2x128xf32>, vector<2x128xf32>, vector<2x128xf32>, vector<2x128xf32>, vector<2x128xf32>, vector<2x128xf32>, vector<2x128xf32>, vector<2x128xf32>, vector<2x128xf32>, vector<2x128xf32>, vector<2x128xf32> -> vector<32x128xf32>
    %67 = vector.extract_strided_slice %16 {offsets = [30, 0], sizes = [2, 1], strides = [1, 1]} : vector<32x1xf32> to vector<2x1xf32>
    %68 = vector.extract_strided_slice %16 {offsets = [28, 0], sizes = [2, 1], strides = [1, 1]} : vector<32x1xf32> to vector<2x1xf32>
    %69 = vector.extract_strided_slice %16 {offsets = [26, 0], sizes = [2, 1], strides = [1, 1]} : vector<32x1xf32> to vector<2x1xf32>
    %70 = vector.extract_strided_slice %16 {offsets = [24, 0], sizes = [2, 1], strides = [1, 1]} : vector<32x1xf32> to vector<2x1xf32>
    %71 = vector.extract_strided_slice %16 {offsets = [22, 0], sizes = [2, 1], strides = [1, 1]} : vector<32x1xf32> to vector<2x1xf32>
    %72 = vector.extract_strided_slice %16 {offsets = [20, 0], sizes = [2, 1], strides = [1, 1]} : vector<32x1xf32> to vector<2x1xf32>
    %73 = vector.extract_strided_slice %16 {offsets = [18, 0], sizes = [2, 1], strides = [1, 1]} : vector<32x1xf32> to vector<2x1xf32>
    %74 = vector.extract_strided_slice %16 {offsets = [16, 0], sizes = [2, 1], strides = [1, 1]} : vector<32x1xf32> to vector<2x1xf32>
    %75 = vector.extract_strided_slice %16 {offsets = [14, 0], sizes = [2, 1], strides = [1, 1]} : vector<32x1xf32> to vector<2x1xf32>
    %76 = vector.extract_strided_slice %16 {offsets = [12, 0], sizes = [2, 1], strides = [1, 1]} : vector<32x1xf32> to vector<2x1xf32>
    %77 = vector.extract_strided_slice %16 {offsets = [10, 0], sizes = [2, 1], strides = [1, 1]} : vector<32x1xf32> to vector<2x1xf32>
    %78 = vector.extract_strided_slice %16 {offsets = [8, 0], sizes = [2, 1], strides = [1, 1]} : vector<32x1xf32> to vector<2x1xf32>
    %79 = vector.extract_strided_slice %16 {offsets = [6, 0], sizes = [2, 1], strides = [1, 1]} : vector<32x1xf32> to vector<2x1xf32>
    %80 = vector.extract_strided_slice %16 {offsets = [4, 0], sizes = [2, 1], strides = [1, 1]} : vector<32x1xf32> to vector<2x1xf32>
    %81 = vector.extract_strided_slice %16 {offsets = [2, 0], sizes = [2, 1], strides = [1, 1]} : vector<32x1xf32> to vector<2x1xf32>
    %82 = vector.extract_strided_slice %16 {offsets = [0, 0], sizes = [2, 1], strides = [1, 1]} : vector<32x1xf32> to vector<2x1xf32>
    %83 = tpu.concatenate %67, %68, %69, %70, %71, %72, %73, %74, %75, %76, %77, %78, %79, %80, %81, %82 in 0 : vector<2x1xf32>, vector<2x1xf32>, vector<2x1xf32>, vector<2x1xf32>, vector<2x1xf32>, vector<2x1xf32>, vector<2x1xf32>, vector<2x1xf32>, vector<2x1xf32>, vector<2x1xf32>, vector<2x1xf32>, vector<2x1xf32>, vector<2x1xf32>, vector<2x1xf32>, vector<2x1xf32>, vector<2x1xf32> -> vector<32x1xf32>
    %84 = vector.shape_cast %35 : vector<1x128xi1> to vector<1x128xi1>
    %85 = vector.broadcast %84 : vector<1x128xi1> to vector<32x128xi1>
    %86 = arith.select %85, %12, %66 : vector<32x128xi1>, vector<32x128xf32>
    %87 = vector.shape_cast %43 : vector<1x32xi1> to vector<1x32xi1>
    %88 = vector.broadcast %87 : vector<1x32xi1> to vector<32x32xi1>
    %89 = vector.shape_cast %16 : vector<32x1xf32> to vector<32x1xf32>
    %90 = vector.broadcast %89 : vector<32x1xf32> to vector<32x32xf32>
    %91 = vector.shape_cast %83 : vector<32x1xf32> to vector<32x1xf32>
    %92 = vector.broadcast %91 : vector<32x1xf32> to vector<32x32xf32>
    %93 = arith.select %88, %90, %92 : vector<32x32xi1>, vector<32x32xf32>
    %cst_17 = arith.constant 0.000000e+00 : f32
    %94 = vector.broadcast %cst_17 : f32 to vector<32x32xf32>
    %95 = arith.cmpf ogt, %93, %94 : vector<32x32xf32>
    %c0_18 = arith.constant 0 : index
    %c0_19 = arith.constant 0 : index
    %96 = vector.load %arg4[%c0_18, %c0_19] : memref<32x128xf32, #tpu.memory_space<vmem>>, vector<32x128xf32>
    %cst_20 = arith.constant 0.000000e+00 : f32
    %97 = vector.broadcast %cst_20 : f32 to vector<2x32xf32>
    %cst_21 = arith.constant 0.000000e+00 : f32
    %98 = vector.broadcast %cst_21 : f32 to vector<2x32xf32>
    %99 = vector.extract_strided_slice %86 {offsets = [0, 0], sizes = [2, 128], strides = [1, 1]} : vector<32x128xf32> to vector<2x128xf32>
    %cst_22 = arith.constant dense<0.000000e+00> : vector<2x128xf32>
    %100 = tpu.matmul %97, %96, %cst_22 {dimension_numbers = #tpu.dot_dimension_numbers<[1], [0], [0], [1], [0, 0, 1, 1], [], []>} : vector<2x32xf32>, vector<32x128xf32>, vector<2x128xf32> -> vector<2x128xf32>
    %101 = arith.addf %99, %100 : vector<2x128xf32>
    %102 = vector.broadcast %46 : vector<1x128xf32> to vector<2x128xf32>
    %103 = arith.mulf %102, %101 : vector<2x128xf32>
    %104 = math.tanh %103 : vector<2x128xf32>
    %105 = vector.broadcast %46 : vector<1x128xf32> to vector<2x128xf32>
    %106 = arith.mulf %105, %104 : vector<2x128xf32>
    %107 = vector.broadcast %49 : vector<1x128xf32> to vector<2x128xf32>
    %108 = arith.addf %107, %106 : vector<2x128xf32>
    %109 = vector.extract_strided_slice %108 {offsets = [0, 0], sizes = [2, 32], strides = [1, 1]} : vector<2x128xf32> to vector<2x32xf32>
    %110 = vector.extract_strided_slice %108 {offsets = [0, 32], sizes = [2, 32], strides = [1, 1]} : vector<2x128xf32> to vector<2x32xf32>
    %111 = vector.extract_strided_slice %108 {offsets = [0, 64], sizes = [2, 32], strides = [1, 1]} : vector<2x128xf32> to vector<2x32xf32>
    %112 = vector.extract_strided_slice %108 {offsets = [0, 96], sizes = [2, 32], strides = [1, 1]} : vector<2x128xf32> to vector<2x32xf32>
    %113 = arith.mulf %110, %98 : vector<2x32xf32>
    %114 = arith.mulf %109, %111 : vector<2x32xf32>
    %115 = arith.addf %113, %114 : vector<2x32xf32>
    %116 = math.tanh %115 : vector<2x32xf32>
    %117 = arith.mulf %112, %116 : vector<2x32xf32>
    %118 = vector.extract_strided_slice %95 {offsets = [0, 0], sizes = [2, 32], strides = [1, 1]} : vector<32x32xi1> to vector<2x32xi1>
    %119 = arith.select %118, %115, %98 : vector<2x32xi1>, vector<2x32xf32>
    %120 = arith.select %118, %117, %97 : vector<2x32xi1>, vector<2x32xf32>
    %cst_23 = arith.constant 0.000000e+00 : f32
    %121 = vector.broadcast %cst_23 : f32 to vector<2x32xf32>
    %122 = arith.select %118, %117, %121 : vector<2x32xi1>, vector<2x32xf32>
    %123 = vector.extract_strided_slice %122 {offsets = [0, 0], sizes = [2, 16], strides = [1, 1]} : vector<2x32xf32> to vector<2x16xf32>
    %124 = vector.extract_strided_slice %122 {offsets = [0, 16], sizes = [2, 16], strides = [1, 1]} : vector<2x32xf32> to vector<2x16xf32>
    %125 = vector.extract_strided_slice %86 {offsets = [2, 0], sizes = [2, 128], strides = [1, 1]} : vector<32x128xf32> to vector<2x128xf32>
    %cst_24 = arith.constant dense<0.000000e+00> : vector<2x128xf32>
    %126 = tpu.matmul %120, %96, %cst_24 {dimension_numbers = #tpu.dot_dimension_numbers<[1], [0], [0], [1], [0, 0, 1, 1], [], []>} : vector<2x32xf32>, vector<32x128xf32>, vector<2x128xf32> -> vector<2x128xf32>
    %127 = arith.addf %125, %126 : vector<2x128xf32>
    %128 = vector.broadcast %46 : vector<1x128xf32> to vector<2x128xf32>
    %129 = arith.mulf %128, %127 : vector<2x128xf32>
    %130 = math.tanh %129 : vector<2x128xf32>
    %131 = vector.broadcast %46 : vector<1x128xf32> to vector<2x128xf32>
    %132 = arith.mulf %131, %130 : vector<2x128xf32>
    %133 = vector.broadcast %49 : vector<1x128xf32> to vector<2x128xf32>
    %134 = arith.addf %133, %132 : vector<2x128xf32>
    %135 = vector.extract_strided_slice %134 {offsets = [0, 0], sizes = [2, 32], strides = [1, 1]} : vector<2x128xf32> to vector<2x32xf32>
    %136 = vector.extract_strided_slice %134 {offsets = [0, 32], sizes = [2, 32], strides = [1, 1]} : vector<2x128xf32> to vector<2x32xf32>
    %137 = vector.extract_strided_slice %134 {offsets = [0, 64], sizes = [2, 32], strides = [1, 1]} : vector<2x128xf32> to vector<2x32xf32>
    %138 = vector.extract_strided_slice %134 {offsets = [0, 96], sizes = [2, 32], strides = [1, 1]} : vector<2x128xf32> to vector<2x32xf32>
    %139 = arith.mulf %136, %119 : vector<2x32xf32>
    %140 = arith.mulf %135, %137 : vector<2x32xf32>
    %141 = arith.addf %139, %140 : vector<2x32xf32>
    %142 = math.tanh %141 : vector<2x32xf32>
    %143 = arith.mulf %138, %142 : vector<2x32xf32>
    %144 = vector.extract_strided_slice %95 {offsets = [2, 0], sizes = [2, 32], strides = [1, 1]} : vector<32x32xi1> to vector<2x32xi1>
    %145 = arith.select %144, %141, %119 : vector<2x32xi1>, vector<2x32xf32>
    %146 = arith.select %144, %143, %120 : vector<2x32xi1>, vector<2x32xf32>
    %cst_25 = arith.constant 0.000000e+00 : f32
    %147 = vector.broadcast %cst_25 : f32 to vector<2x32xf32>
    %148 = arith.select %144, %143, %147 : vector<2x32xi1>, vector<2x32xf32>
    %149 = vector.extract_strided_slice %148 {offsets = [0, 0], sizes = [2, 16], strides = [1, 1]} : vector<2x32xf32> to vector<2x16xf32>
    %150 = vector.extract_strided_slice %148 {offsets = [0, 16], sizes = [2, 16], strides = [1, 1]} : vector<2x32xf32> to vector<2x16xf32>
    %151 = vector.extract_strided_slice %86 {offsets = [4, 0], sizes = [2, 128], strides = [1, 1]} : vector<32x128xf32> to vector<2x128xf32>
    %cst_26 = arith.constant dense<0.000000e+00> : vector<2x128xf32>
    %152 = tpu.matmul %146, %96, %cst_26 {dimension_numbers = #tpu.dot_dimension_numbers<[1], [0], [0], [1], [0, 0, 1, 1], [], []>} : vector<2x32xf32>, vector<32x128xf32>, vector<2x128xf32> -> vector<2x128xf32>
    %153 = arith.addf %151, %152 : vector<2x128xf32>
    %154 = vector.broadcast %46 : vector<1x128xf32> to vector<2x128xf32>
    %155 = arith.mulf %154, %153 : vector<2x128xf32>
    %156 = math.tanh %155 : vector<2x128xf32>
    %157 = vector.broadcast %46 : vector<1x128xf32> to vector<2x128xf32>
    %158 = arith.mulf %157, %156 : vector<2x128xf32>
    %159 = vector.broadcast %49 : vector<1x128xf32> to vector<2x128xf32>
    %160 = arith.addf %159, %158 : vector<2x128xf32>
    %161 = vector.extract_strided_slice %160 {offsets = [0, 0], sizes = [2, 32], strides = [1, 1]} : vector<2x128xf32> to vector<2x32xf32>
    %162 = vector.extract_strided_slice %160 {offsets = [0, 32], sizes = [2, 32], strides = [1, 1]} : vector<2x128xf32> to vector<2x32xf32>
    %163 = vector.extract_strided_slice %160 {offsets = [0, 64], sizes = [2, 32], strides = [1, 1]} : vector<2x128xf32> to vector<2x32xf32>
    %164 = vector.extract_strided_slice %160 {offsets = [0, 96], sizes = [2, 32], strides = [1, 1]} : vector<2x128xf32> to vector<2x32xf32>
    %165 = arith.mulf %162, %145 : vector<2x32xf32>
    %166 = arith.mulf %161, %163 : vector<2x32xf32>
    %167 = arith.addf %165, %166 : vector<2x32xf32>
    %168 = math.tanh %167 : vector<2x32xf32>
    %169 = arith.mulf %164, %168 : vector<2x32xf32>
    %170 = vector.extract_strided_slice %95 {offsets = [4, 0], sizes = [2, 32], strides = [1, 1]} : vector<32x32xi1> to vector<2x32xi1>
    %171 = arith.select %170, %167, %145 : vector<2x32xi1>, vector<2x32xf32>
    %172 = arith.select %170, %169, %146 : vector<2x32xi1>, vector<2x32xf32>
    %cst_27 = arith.constant 0.000000e+00 : f32
    %173 = vector.broadcast %cst_27 : f32 to vector<2x32xf32>
    %174 = arith.select %170, %169, %173 : vector<2x32xi1>, vector<2x32xf32>
    %175 = vector.extract_strided_slice %174 {offsets = [0, 0], sizes = [2, 16], strides = [1, 1]} : vector<2x32xf32> to vector<2x16xf32>
    %176 = vector.extract_strided_slice %174 {offsets = [0, 16], sizes = [2, 16], strides = [1, 1]} : vector<2x32xf32> to vector<2x16xf32>
    %177 = vector.extract_strided_slice %86 {offsets = [6, 0], sizes = [2, 128], strides = [1, 1]} : vector<32x128xf32> to vector<2x128xf32>
    %cst_28 = arith.constant dense<0.000000e+00> : vector<2x128xf32>
    %178 = tpu.matmul %172, %96, %cst_28 {dimension_numbers = #tpu.dot_dimension_numbers<[1], [0], [0], [1], [0, 0, 1, 1], [], []>} : vector<2x32xf32>, vector<32x128xf32>, vector<2x128xf32> -> vector<2x128xf32>
    %179 = arith.addf %177, %178 : vector<2x128xf32>
    %180 = vector.broadcast %46 : vector<1x128xf32> to vector<2x128xf32>
    %181 = arith.mulf %180, %179 : vector<2x128xf32>
    %182 = math.tanh %181 : vector<2x128xf32>
    %183 = vector.broadcast %46 : vector<1x128xf32> to vector<2x128xf32>
    %184 = arith.mulf %183, %182 : vector<2x128xf32>
    %185 = vector.broadcast %49 : vector<1x128xf32> to vector<2x128xf32>
    %186 = arith.addf %185, %184 : vector<2x128xf32>
    %187 = vector.extract_strided_slice %186 {offsets = [0, 0], sizes = [2, 32], strides = [1, 1]} : vector<2x128xf32> to vector<2x32xf32>
    %188 = vector.extract_strided_slice %186 {offsets = [0, 32], sizes = [2, 32], strides = [1, 1]} : vector<2x128xf32> to vector<2x32xf32>
    %189 = vector.extract_strided_slice %186 {offsets = [0, 64], sizes = [2, 32], strides = [1, 1]} : vector<2x128xf32> to vector<2x32xf32>
    %190 = vector.extract_strided_slice %186 {offsets = [0, 96], sizes = [2, 32], strides = [1, 1]} : vector<2x128xf32> to vector<2x32xf32>
    %191 = arith.mulf %188, %171 : vector<2x32xf32>
    %192 = arith.mulf %187, %189 : vector<2x32xf32>
    %193 = arith.addf %191, %192 : vector<2x32xf32>
    %194 = math.tanh %193 : vector<2x32xf32>
    %195 = arith.mulf %190, %194 : vector<2x32xf32>
    %196 = vector.extract_strided_slice %95 {offsets = [6, 0], sizes = [2, 32], strides = [1, 1]} : vector<32x32xi1> to vector<2x32xi1>
    %197 = arith.select %196, %193, %171 : vector<2x32xi1>, vector<2x32xf32>
    %198 = arith.select %196, %195, %172 : vector<2x32xi1>, vector<2x32xf32>
    %cst_29 = arith.constant 0.000000e+00 : f32
    %199 = vector.broadcast %cst_29 : f32 to vector<2x32xf32>
    %200 = arith.select %196, %195, %199 : vector<2x32xi1>, vector<2x32xf32>
    %201 = vector.extract_strided_slice %200 {offsets = [0, 0], sizes = [2, 16], strides = [1, 1]} : vector<2x32xf32> to vector<2x16xf32>
    %202 = vector.extract_strided_slice %200 {offsets = [0, 16], sizes = [2, 16], strides = [1, 1]} : vector<2x32xf32> to vector<2x16xf32>
    %203 = vector.extract_strided_slice %86 {offsets = [8, 0], sizes = [2, 128], strides = [1, 1]} : vector<32x128xf32> to vector<2x128xf32>
    %cst_30 = arith.constant dense<0.000000e+00> : vector<2x128xf32>
    %204 = tpu.matmul %198, %96, %cst_30 {dimension_numbers = #tpu.dot_dimension_numbers<[1], [0], [0], [1], [0, 0, 1, 1], [], []>} : vector<2x32xf32>, vector<32x128xf32>, vector<2x128xf32> -> vector<2x128xf32>
    %205 = arith.addf %203, %204 : vector<2x128xf32>
    %206 = vector.broadcast %46 : vector<1x128xf32> to vector<2x128xf32>
    %207 = arith.mulf %206, %205 : vector<2x128xf32>
    %208 = math.tanh %207 : vector<2x128xf32>
    %209 = vector.broadcast %46 : vector<1x128xf32> to vector<2x128xf32>
    %210 = arith.mulf %209, %208 : vector<2x128xf32>
    %211 = vector.broadcast %49 : vector<1x128xf32> to vector<2x128xf32>
    %212 = arith.addf %211, %210 : vector<2x128xf32>
    %213 = vector.extract_strided_slice %212 {offsets = [0, 0], sizes = [2, 32], strides = [1, 1]} : vector<2x128xf32> to vector<2x32xf32>
    %214 = vector.extract_strided_slice %212 {offsets = [0, 32], sizes = [2, 32], strides = [1, 1]} : vector<2x128xf32> to vector<2x32xf32>
    %215 = vector.extract_strided_slice %212 {offsets = [0, 64], sizes = [2, 32], strides = [1, 1]} : vector<2x128xf32> to vector<2x32xf32>
    %216 = vector.extract_strided_slice %212 {offsets = [0, 96], sizes = [2, 32], strides = [1, 1]} : vector<2x128xf32> to vector<2x32xf32>
    %217 = arith.mulf %214, %197 : vector<2x32xf32>
    %218 = arith.mulf %213, %215 : vector<2x32xf32>
    %219 = arith.addf %217, %218 : vector<2x32xf32>
    %220 = math.tanh %219 : vector<2x32xf32>
    %221 = arith.mulf %216, %220 : vector<2x32xf32>
    %222 = vector.extract_strided_slice %95 {offsets = [8, 0], sizes = [2, 32], strides = [1, 1]} : vector<32x32xi1> to vector<2x32xi1>
    %223 = arith.select %222, %219, %197 : vector<2x32xi1>, vector<2x32xf32>
    %224 = arith.select %222, %221, %198 : vector<2x32xi1>, vector<2x32xf32>
    %cst_31 = arith.constant 0.000000e+00 : f32
    %225 = vector.broadcast %cst_31 : f32 to vector<2x32xf32>
    %226 = arith.select %222, %221, %225 : vector<2x32xi1>, vector<2x32xf32>
    %227 = vector.extract_strided_slice %226 {offsets = [0, 0], sizes = [2, 16], strides = [1, 1]} : vector<2x32xf32> to vector<2x16xf32>
    %228 = vector.extract_strided_slice %226 {offsets = [0, 16], sizes = [2, 16], strides = [1, 1]} : vector<2x32xf32> to vector<2x16xf32>
    %229 = vector.extract_strided_slice %86 {offsets = [10, 0], sizes = [2, 128], strides = [1, 1]} : vector<32x128xf32> to vector<2x128xf32>
    %cst_32 = arith.constant dense<0.000000e+00> : vector<2x128xf32>
    %230 = tpu.matmul %224, %96, %cst_32 {dimension_numbers = #tpu.dot_dimension_numbers<[1], [0], [0], [1], [0, 0, 1, 1], [], []>} : vector<2x32xf32>, vector<32x128xf32>, vector<2x128xf32> -> vector<2x128xf32>
    %231 = arith.addf %229, %230 : vector<2x128xf32>
    %232 = vector.broadcast %46 : vector<1x128xf32> to vector<2x128xf32>
    %233 = arith.mulf %232, %231 : vector<2x128xf32>
    %234 = math.tanh %233 : vector<2x128xf32>
    %235 = vector.broadcast %46 : vector<1x128xf32> to vector<2x128xf32>
    %236 = arith.mulf %235, %234 : vector<2x128xf32>
    %237 = vector.broadcast %49 : vector<1x128xf32> to vector<2x128xf32>
    %238 = arith.addf %237, %236 : vector<2x128xf32>
    %239 = vector.extract_strided_slice %238 {offsets = [0, 0], sizes = [2, 32], strides = [1, 1]} : vector<2x128xf32> to vector<2x32xf32>
    %240 = vector.extract_strided_slice %238 {offsets = [0, 32], sizes = [2, 32], strides = [1, 1]} : vector<2x128xf32> to vector<2x32xf32>
    %241 = vector.extract_strided_slice %238 {offsets = [0, 64], sizes = [2, 32], strides = [1, 1]} : vector<2x128xf32> to vector<2x32xf32>
    %242 = vector.extract_strided_slice %238 {offsets = [0, 96], sizes = [2, 32], strides = [1, 1]} : vector<2x128xf32> to vector<2x32xf32>
    %243 = arith.mulf %240, %223 : vector<2x32xf32>
    %244 = arith.mulf %239, %241 : vector<2x32xf32>
    %245 = arith.addf %243, %244 : vector<2x32xf32>
    %246 = math.tanh %245 : vector<2x32xf32>
    %247 = arith.mulf %242, %246 : vector<2x32xf32>
    %248 = vector.extract_strided_slice %95 {offsets = [10, 0], sizes = [2, 32], strides = [1, 1]} : vector<32x32xi1> to vector<2x32xi1>
    %249 = arith.select %248, %245, %223 : vector<2x32xi1>, vector<2x32xf32>
    %250 = arith.select %248, %247, %224 : vector<2x32xi1>, vector<2x32xf32>
    %cst_33 = arith.constant 0.000000e+00 : f32
    %251 = vector.broadcast %cst_33 : f32 to vector<2x32xf32>
    %252 = arith.select %248, %247, %251 : vector<2x32xi1>, vector<2x32xf32>
    %253 = vector.extract_strided_slice %252 {offsets = [0, 0], sizes = [2, 16], strides = [1, 1]} : vector<2x32xf32> to vector<2x16xf32>
    %254 = vector.extract_strided_slice %252 {offsets = [0, 16], sizes = [2, 16], strides = [1, 1]} : vector<2x32xf32> to vector<2x16xf32>
    %255 = vector.extract_strided_slice %86 {offsets = [12, 0], sizes = [2, 128], strides = [1, 1]} : vector<32x128xf32> to vector<2x128xf32>
    %cst_34 = arith.constant dense<0.000000e+00> : vector<2x128xf32>
    %256 = tpu.matmul %250, %96, %cst_34 {dimension_numbers = #tpu.dot_dimension_numbers<[1], [0], [0], [1], [0, 0, 1, 1], [], []>} : vector<2x32xf32>, vector<32x128xf32>, vector<2x128xf32> -> vector<2x128xf32>
    %257 = arith.addf %255, %256 : vector<2x128xf32>
    %258 = vector.broadcast %46 : vector<1x128xf32> to vector<2x128xf32>
    %259 = arith.mulf %258, %257 : vector<2x128xf32>
    %260 = math.tanh %259 : vector<2x128xf32>
    %261 = vector.broadcast %46 : vector<1x128xf32> to vector<2x128xf32>
    %262 = arith.mulf %261, %260 : vector<2x128xf32>
    %263 = vector.broadcast %49 : vector<1x128xf32> to vector<2x128xf32>
    %264 = arith.addf %263, %262 : vector<2x128xf32>
    %265 = vector.extract_strided_slice %264 {offsets = [0, 0], sizes = [2, 32], strides = [1, 1]} : vector<2x128xf32> to vector<2x32xf32>
    %266 = vector.extract_strided_slice %264 {offsets = [0, 32], sizes = [2, 32], strides = [1, 1]} : vector<2x128xf32> to vector<2x32xf32>
    %267 = vector.extract_strided_slice %264 {offsets = [0, 64], sizes = [2, 32], strides = [1, 1]} : vector<2x128xf32> to vector<2x32xf32>
    %268 = vector.extract_strided_slice %264 {offsets = [0, 96], sizes = [2, 32], strides = [1, 1]} : vector<2x128xf32> to vector<2x32xf32>
    %269 = arith.mulf %266, %249 : vector<2x32xf32>
    %270 = arith.mulf %265, %267 : vector<2x32xf32>
    %271 = arith.addf %269, %270 : vector<2x32xf32>
    %272 = math.tanh %271 : vector<2x32xf32>
    %273 = arith.mulf %268, %272 : vector<2x32xf32>
    %274 = vector.extract_strided_slice %95 {offsets = [12, 0], sizes = [2, 32], strides = [1, 1]} : vector<32x32xi1> to vector<2x32xi1>
    %275 = arith.select %274, %271, %249 : vector<2x32xi1>, vector<2x32xf32>
    %276 = arith.select %274, %273, %250 : vector<2x32xi1>, vector<2x32xf32>
    %cst_35 = arith.constant 0.000000e+00 : f32
    %277 = vector.broadcast %cst_35 : f32 to vector<2x32xf32>
    %278 = arith.select %274, %273, %277 : vector<2x32xi1>, vector<2x32xf32>
    %279 = vector.extract_strided_slice %278 {offsets = [0, 0], sizes = [2, 16], strides = [1, 1]} : vector<2x32xf32> to vector<2x16xf32>
    %280 = vector.extract_strided_slice %278 {offsets = [0, 16], sizes = [2, 16], strides = [1, 1]} : vector<2x32xf32> to vector<2x16xf32>
    %281 = vector.extract_strided_slice %86 {offsets = [14, 0], sizes = [2, 128], strides = [1, 1]} : vector<32x128xf32> to vector<2x128xf32>
    %cst_36 = arith.constant dense<0.000000e+00> : vector<2x128xf32>
    %282 = tpu.matmul %276, %96, %cst_36 {dimension_numbers = #tpu.dot_dimension_numbers<[1], [0], [0], [1], [0, 0, 1, 1], [], []>} : vector<2x32xf32>, vector<32x128xf32>, vector<2x128xf32> -> vector<2x128xf32>
    %283 = arith.addf %281, %282 : vector<2x128xf32>
    %284 = vector.broadcast %46 : vector<1x128xf32> to vector<2x128xf32>
    %285 = arith.mulf %284, %283 : vector<2x128xf32>
    %286 = math.tanh %285 : vector<2x128xf32>
    %287 = vector.broadcast %46 : vector<1x128xf32> to vector<2x128xf32>
    %288 = arith.mulf %287, %286 : vector<2x128xf32>
    %289 = vector.broadcast %49 : vector<1x128xf32> to vector<2x128xf32>
    %290 = arith.addf %289, %288 : vector<2x128xf32>
    %291 = vector.extract_strided_slice %290 {offsets = [0, 0], sizes = [2, 32], strides = [1, 1]} : vector<2x128xf32> to vector<2x32xf32>
    %292 = vector.extract_strided_slice %290 {offsets = [0, 32], sizes = [2, 32], strides = [1, 1]} : vector<2x128xf32> to vector<2x32xf32>
    %293 = vector.extract_strided_slice %290 {offsets = [0, 64], sizes = [2, 32], strides = [1, 1]} : vector<2x128xf32> to vector<2x32xf32>
    %294 = vector.extract_strided_slice %290 {offsets = [0, 96], sizes = [2, 32], strides = [1, 1]} : vector<2x128xf32> to vector<2x32xf32>
    %295 = arith.mulf %292, %275 : vector<2x32xf32>
    %296 = arith.mulf %291, %293 : vector<2x32xf32>
    %297 = arith.addf %295, %296 : vector<2x32xf32>
    %298 = math.tanh %297 : vector<2x32xf32>
    %299 = arith.mulf %294, %298 : vector<2x32xf32>
    %300 = vector.extract_strided_slice %95 {offsets = [14, 0], sizes = [2, 32], strides = [1, 1]} : vector<32x32xi1> to vector<2x32xi1>
    %301 = arith.select %300, %297, %275 : vector<2x32xi1>, vector<2x32xf32>
    %302 = arith.select %300, %299, %276 : vector<2x32xi1>, vector<2x32xf32>
    %cst_37 = arith.constant 0.000000e+00 : f32
    %303 = vector.broadcast %cst_37 : f32 to vector<2x32xf32>
    %304 = arith.select %300, %299, %303 : vector<2x32xi1>, vector<2x32xf32>
    %305 = vector.extract_strided_slice %304 {offsets = [0, 0], sizes = [2, 16], strides = [1, 1]} : vector<2x32xf32> to vector<2x16xf32>
    %306 = vector.extract_strided_slice %304 {offsets = [0, 16], sizes = [2, 16], strides = [1, 1]} : vector<2x32xf32> to vector<2x16xf32>
    %307 = vector.extract_strided_slice %86 {offsets = [16, 0], sizes = [2, 128], strides = [1, 1]} : vector<32x128xf32> to vector<2x128xf32>
    %cst_38 = arith.constant dense<0.000000e+00> : vector<2x128xf32>
    %308 = tpu.matmul %302, %96, %cst_38 {dimension_numbers = #tpu.dot_dimension_numbers<[1], [0], [0], [1], [0, 0, 1, 1], [], []>} : vector<2x32xf32>, vector<32x128xf32>, vector<2x128xf32> -> vector<2x128xf32>
    %309 = arith.addf %307, %308 : vector<2x128xf32>
    %310 = vector.broadcast %46 : vector<1x128xf32> to vector<2x128xf32>
    %311 = arith.mulf %310, %309 : vector<2x128xf32>
    %312 = math.tanh %311 : vector<2x128xf32>
    %313 = vector.broadcast %46 : vector<1x128xf32> to vector<2x128xf32>
    %314 = arith.mulf %313, %312 : vector<2x128xf32>
    %315 = vector.broadcast %49 : vector<1x128xf32> to vector<2x128xf32>
    %316 = arith.addf %315, %314 : vector<2x128xf32>
    %317 = vector.extract_strided_slice %316 {offsets = [0, 0], sizes = [2, 32], strides = [1, 1]} : vector<2x128xf32> to vector<2x32xf32>
    %318 = vector.extract_strided_slice %316 {offsets = [0, 32], sizes = [2, 32], strides = [1, 1]} : vector<2x128xf32> to vector<2x32xf32>
    %319 = vector.extract_strided_slice %316 {offsets = [0, 64], sizes = [2, 32], strides = [1, 1]} : vector<2x128xf32> to vector<2x32xf32>
    %320 = vector.extract_strided_slice %316 {offsets = [0, 96], sizes = [2, 32], strides = [1, 1]} : vector<2x128xf32> to vector<2x32xf32>
    %321 = arith.mulf %318, %301 : vector<2x32xf32>
    %322 = arith.mulf %317, %319 : vector<2x32xf32>
    %323 = arith.addf %321, %322 : vector<2x32xf32>
    %324 = math.tanh %323 : vector<2x32xf32>
    %325 = arith.mulf %320, %324 : vector<2x32xf32>
    %326 = vector.extract_strided_slice %95 {offsets = [16, 0], sizes = [2, 32], strides = [1, 1]} : vector<32x32xi1> to vector<2x32xi1>
    %327 = arith.select %326, %323, %301 : vector<2x32xi1>, vector<2x32xf32>
    %328 = arith.select %326, %325, %302 : vector<2x32xi1>, vector<2x32xf32>
    %cst_39 = arith.constant 0.000000e+00 : f32
    %329 = vector.broadcast %cst_39 : f32 to vector<2x32xf32>
    %330 = arith.select %326, %325, %329 : vector<2x32xi1>, vector<2x32xf32>
    %331 = vector.extract_strided_slice %330 {offsets = [0, 0], sizes = [2, 16], strides = [1, 1]} : vector<2x32xf32> to vector<2x16xf32>
    %332 = vector.extract_strided_slice %330 {offsets = [0, 16], sizes = [2, 16], strides = [1, 1]} : vector<2x32xf32> to vector<2x16xf32>
    %333 = vector.extract_strided_slice %86 {offsets = [18, 0], sizes = [2, 128], strides = [1, 1]} : vector<32x128xf32> to vector<2x128xf32>
    %cst_40 = arith.constant dense<0.000000e+00> : vector<2x128xf32>
    %334 = tpu.matmul %328, %96, %cst_40 {dimension_numbers = #tpu.dot_dimension_numbers<[1], [0], [0], [1], [0, 0, 1, 1], [], []>} : vector<2x32xf32>, vector<32x128xf32>, vector<2x128xf32> -> vector<2x128xf32>
    %335 = arith.addf %333, %334 : vector<2x128xf32>
    %336 = vector.broadcast %46 : vector<1x128xf32> to vector<2x128xf32>
    %337 = arith.mulf %336, %335 : vector<2x128xf32>
    %338 = math.tanh %337 : vector<2x128xf32>
    %339 = vector.broadcast %46 : vector<1x128xf32> to vector<2x128xf32>
    %340 = arith.mulf %339, %338 : vector<2x128xf32>
    %341 = vector.broadcast %49 : vector<1x128xf32> to vector<2x128xf32>
    %342 = arith.addf %341, %340 : vector<2x128xf32>
    %343 = vector.extract_strided_slice %342 {offsets = [0, 0], sizes = [2, 32], strides = [1, 1]} : vector<2x128xf32> to vector<2x32xf32>
    %344 = vector.extract_strided_slice %342 {offsets = [0, 32], sizes = [2, 32], strides = [1, 1]} : vector<2x128xf32> to vector<2x32xf32>
    %345 = vector.extract_strided_slice %342 {offsets = [0, 64], sizes = [2, 32], strides = [1, 1]} : vector<2x128xf32> to vector<2x32xf32>
    %346 = vector.extract_strided_slice %342 {offsets = [0, 96], sizes = [2, 32], strides = [1, 1]} : vector<2x128xf32> to vector<2x32xf32>
    %347 = arith.mulf %344, %327 : vector<2x32xf32>
    %348 = arith.mulf %343, %345 : vector<2x32xf32>
    %349 = arith.addf %347, %348 : vector<2x32xf32>
    %350 = math.tanh %349 : vector<2x32xf32>
    %351 = arith.mulf %346, %350 : vector<2x32xf32>
    %352 = vector.extract_strided_slice %95 {offsets = [18, 0], sizes = [2, 32], strides = [1, 1]} : vector<32x32xi1> to vector<2x32xi1>
    %353 = arith.select %352, %349, %327 : vector<2x32xi1>, vector<2x32xf32>
    %354 = arith.select %352, %351, %328 : vector<2x32xi1>, vector<2x32xf32>
    %cst_41 = arith.constant 0.000000e+00 : f32
    %355 = vector.broadcast %cst_41 : f32 to vector<2x32xf32>
    %356 = arith.select %352, %351, %355 : vector<2x32xi1>, vector<2x32xf32>
    %357 = vector.extract_strided_slice %356 {offsets = [0, 0], sizes = [2, 16], strides = [1, 1]} : vector<2x32xf32> to vector<2x16xf32>
    %358 = vector.extract_strided_slice %356 {offsets = [0, 16], sizes = [2, 16], strides = [1, 1]} : vector<2x32xf32> to vector<2x16xf32>
    %359 = vector.extract_strided_slice %86 {offsets = [20, 0], sizes = [2, 128], strides = [1, 1]} : vector<32x128xf32> to vector<2x128xf32>
    %cst_42 = arith.constant dense<0.000000e+00> : vector<2x128xf32>
    %360 = tpu.matmul %354, %96, %cst_42 {dimension_numbers = #tpu.dot_dimension_numbers<[1], [0], [0], [1], [0, 0, 1, 1], [], []>} : vector<2x32xf32>, vector<32x128xf32>, vector<2x128xf32> -> vector<2x128xf32>
    %361 = arith.addf %359, %360 : vector<2x128xf32>
    %362 = vector.broadcast %46 : vector<1x128xf32> to vector<2x128xf32>
    %363 = arith.mulf %362, %361 : vector<2x128xf32>
    %364 = math.tanh %363 : vector<2x128xf32>
    %365 = vector.broadcast %46 : vector<1x128xf32> to vector<2x128xf32>
    %366 = arith.mulf %365, %364 : vector<2x128xf32>
    %367 = vector.broadcast %49 : vector<1x128xf32> to vector<2x128xf32>
    %368 = arith.addf %367, %366 : vector<2x128xf32>
    %369 = vector.extract_strided_slice %368 {offsets = [0, 0], sizes = [2, 32], strides = [1, 1]} : vector<2x128xf32> to vector<2x32xf32>
    %370 = vector.extract_strided_slice %368 {offsets = [0, 32], sizes = [2, 32], strides = [1, 1]} : vector<2x128xf32> to vector<2x32xf32>
    %371 = vector.extract_strided_slice %368 {offsets = [0, 64], sizes = [2, 32], strides = [1, 1]} : vector<2x128xf32> to vector<2x32xf32>
    %372 = vector.extract_strided_slice %368 {offsets = [0, 96], sizes = [2, 32], strides = [1, 1]} : vector<2x128xf32> to vector<2x32xf32>
    %373 = arith.mulf %370, %353 : vector<2x32xf32>
    %374 = arith.mulf %369, %371 : vector<2x32xf32>
    %375 = arith.addf %373, %374 : vector<2x32xf32>
    %376 = math.tanh %375 : vector<2x32xf32>
    %377 = arith.mulf %372, %376 : vector<2x32xf32>
    %378 = vector.extract_strided_slice %95 {offsets = [20, 0], sizes = [2, 32], strides = [1, 1]} : vector<32x32xi1> to vector<2x32xi1>
    %379 = arith.select %378, %375, %353 : vector<2x32xi1>, vector<2x32xf32>
    %380 = arith.select %378, %377, %354 : vector<2x32xi1>, vector<2x32xf32>
    %cst_43 = arith.constant 0.000000e+00 : f32
    %381 = vector.broadcast %cst_43 : f32 to vector<2x32xf32>
    %382 = arith.select %378, %377, %381 : vector<2x32xi1>, vector<2x32xf32>
    %383 = vector.extract_strided_slice %382 {offsets = [0, 0], sizes = [2, 16], strides = [1, 1]} : vector<2x32xf32> to vector<2x16xf32>
    %384 = vector.extract_strided_slice %382 {offsets = [0, 16], sizes = [2, 16], strides = [1, 1]} : vector<2x32xf32> to vector<2x16xf32>
    %385 = vector.extract_strided_slice %86 {offsets = [22, 0], sizes = [2, 128], strides = [1, 1]} : vector<32x128xf32> to vector<2x128xf32>
    %cst_44 = arith.constant dense<0.000000e+00> : vector<2x128xf32>
    %386 = tpu.matmul %380, %96, %cst_44 {dimension_numbers = #tpu.dot_dimension_numbers<[1], [0], [0], [1], [0, 0, 1, 1], [], []>} : vector<2x32xf32>, vector<32x128xf32>, vector<2x128xf32> -> vector<2x128xf32>
    %387 = arith.addf %385, %386 : vector<2x128xf32>
    %388 = vector.broadcast %46 : vector<1x128xf32> to vector<2x128xf32>
    %389 = arith.mulf %388, %387 : vector<2x128xf32>
    %390 = math.tanh %389 : vector<2x128xf32>
    %391 = vector.broadcast %46 : vector<1x128xf32> to vector<2x128xf32>
    %392 = arith.mulf %391, %390 : vector<2x128xf32>
    %393 = vector.broadcast %49 : vector<1x128xf32> to vector<2x128xf32>
    %394 = arith.addf %393, %392 : vector<2x128xf32>
    %395 = vector.extract_strided_slice %394 {offsets = [0, 0], sizes = [2, 32], strides = [1, 1]} : vector<2x128xf32> to vector<2x32xf32>
    %396 = vector.extract_strided_slice %394 {offsets = [0, 32], sizes = [2, 32], strides = [1, 1]} : vector<2x128xf32> to vector<2x32xf32>
    %397 = vector.extract_strided_slice %394 {offsets = [0, 64], sizes = [2, 32], strides = [1, 1]} : vector<2x128xf32> to vector<2x32xf32>
    %398 = vector.extract_strided_slice %394 {offsets = [0, 96], sizes = [2, 32], strides = [1, 1]} : vector<2x128xf32> to vector<2x32xf32>
    %399 = arith.mulf %396, %379 : vector<2x32xf32>
    %400 = arith.mulf %395, %397 : vector<2x32xf32>
    %401 = arith.addf %399, %400 : vector<2x32xf32>
    %402 = math.tanh %401 : vector<2x32xf32>
    %403 = arith.mulf %398, %402 : vector<2x32xf32>
    %404 = vector.extract_strided_slice %95 {offsets = [22, 0], sizes = [2, 32], strides = [1, 1]} : vector<32x32xi1> to vector<2x32xi1>
    %405 = arith.select %404, %401, %379 : vector<2x32xi1>, vector<2x32xf32>
    %406 = arith.select %404, %403, %380 : vector<2x32xi1>, vector<2x32xf32>
    %cst_45 = arith.constant 0.000000e+00 : f32
    %407 = vector.broadcast %cst_45 : f32 to vector<2x32xf32>
    %408 = arith.select %404, %403, %407 : vector<2x32xi1>, vector<2x32xf32>
    %409 = vector.extract_strided_slice %408 {offsets = [0, 0], sizes = [2, 16], strides = [1, 1]} : vector<2x32xf32> to vector<2x16xf32>
    %410 = vector.extract_strided_slice %408 {offsets = [0, 16], sizes = [2, 16], strides = [1, 1]} : vector<2x32xf32> to vector<2x16xf32>
    %411 = vector.extract_strided_slice %86 {offsets = [24, 0], sizes = [2, 128], strides = [1, 1]} : vector<32x128xf32> to vector<2x128xf32>
    %cst_46 = arith.constant dense<0.000000e+00> : vector<2x128xf32>
    %412 = tpu.matmul %406, %96, %cst_46 {dimension_numbers = #tpu.dot_dimension_numbers<[1], [0], [0], [1], [0, 0, 1, 1], [], []>} : vector<2x32xf32>, vector<32x128xf32>, vector<2x128xf32> -> vector<2x128xf32>
    %413 = arith.addf %411, %412 : vector<2x128xf32>
    %414 = vector.broadcast %46 : vector<1x128xf32> to vector<2x128xf32>
    %415 = arith.mulf %414, %413 : vector<2x128xf32>
    %416 = math.tanh %415 : vector<2x128xf32>
    %417 = vector.broadcast %46 : vector<1x128xf32> to vector<2x128xf32>
    %418 = arith.mulf %417, %416 : vector<2x128xf32>
    %419 = vector.broadcast %49 : vector<1x128xf32> to vector<2x128xf32>
    %420 = arith.addf %419, %418 : vector<2x128xf32>
    %421 = vector.extract_strided_slice %420 {offsets = [0, 0], sizes = [2, 32], strides = [1, 1]} : vector<2x128xf32> to vector<2x32xf32>
    %422 = vector.extract_strided_slice %420 {offsets = [0, 32], sizes = [2, 32], strides = [1, 1]} : vector<2x128xf32> to vector<2x32xf32>
    %423 = vector.extract_strided_slice %420 {offsets = [0, 64], sizes = [2, 32], strides = [1, 1]} : vector<2x128xf32> to vector<2x32xf32>
    %424 = vector.extract_strided_slice %420 {offsets = [0, 96], sizes = [2, 32], strides = [1, 1]} : vector<2x128xf32> to vector<2x32xf32>
    %425 = arith.mulf %422, %405 : vector<2x32xf32>
    %426 = arith.mulf %421, %423 : vector<2x32xf32>
    %427 = arith.addf %425, %426 : vector<2x32xf32>
    %428 = math.tanh %427 : vector<2x32xf32>
    %429 = arith.mulf %424, %428 : vector<2x32xf32>
    %430 = vector.extract_strided_slice %95 {offsets = [24, 0], sizes = [2, 32], strides = [1, 1]} : vector<32x32xi1> to vector<2x32xi1>
    %431 = arith.select %430, %427, %405 : vector<2x32xi1>, vector<2x32xf32>
    %432 = arith.select %430, %429, %406 : vector<2x32xi1>, vector<2x32xf32>
    %cst_47 = arith.constant 0.000000e+00 : f32
    %433 = vector.broadcast %cst_47 : f32 to vector<2x32xf32>
    %434 = arith.select %430, %429, %433 : vector<2x32xi1>, vector<2x32xf32>
    %435 = vector.extract_strided_slice %434 {offsets = [0, 0], sizes = [2, 16], strides = [1, 1]} : vector<2x32xf32> to vector<2x16xf32>
    %436 = vector.extract_strided_slice %434 {offsets = [0, 16], sizes = [2, 16], strides = [1, 1]} : vector<2x32xf32> to vector<2x16xf32>
    %437 = vector.extract_strided_slice %86 {offsets = [26, 0], sizes = [2, 128], strides = [1, 1]} : vector<32x128xf32> to vector<2x128xf32>
    %cst_48 = arith.constant dense<0.000000e+00> : vector<2x128xf32>
    %438 = tpu.matmul %432, %96, %cst_48 {dimension_numbers = #tpu.dot_dimension_numbers<[1], [0], [0], [1], [0, 0, 1, 1], [], []>} : vector<2x32xf32>, vector<32x128xf32>, vector<2x128xf32> -> vector<2x128xf32>
    %439 = arith.addf %437, %438 : vector<2x128xf32>
    %440 = vector.broadcast %46 : vector<1x128xf32> to vector<2x128xf32>
    %441 = arith.mulf %440, %439 : vector<2x128xf32>
    %442 = math.tanh %441 : vector<2x128xf32>
    %443 = vector.broadcast %46 : vector<1x128xf32> to vector<2x128xf32>
    %444 = arith.mulf %443, %442 : vector<2x128xf32>
    %445 = vector.broadcast %49 : vector<1x128xf32> to vector<2x128xf32>
    %446 = arith.addf %445, %444 : vector<2x128xf32>
    %447 = vector.extract_strided_slice %446 {offsets = [0, 0], sizes = [2, 32], strides = [1, 1]} : vector<2x128xf32> to vector<2x32xf32>
    %448 = vector.extract_strided_slice %446 {offsets = [0, 32], sizes = [2, 32], strides = [1, 1]} : vector<2x128xf32> to vector<2x32xf32>
    %449 = vector.extract_strided_slice %446 {offsets = [0, 64], sizes = [2, 32], strides = [1, 1]} : vector<2x128xf32> to vector<2x32xf32>
    %450 = vector.extract_strided_slice %446 {offsets = [0, 96], sizes = [2, 32], strides = [1, 1]} : vector<2x128xf32> to vector<2x32xf32>
    %451 = arith.mulf %448, %431 : vector<2x32xf32>
    %452 = arith.mulf %447, %449 : vector<2x32xf32>
    %453 = arith.addf %451, %452 : vector<2x32xf32>
    %454 = math.tanh %453 : vector<2x32xf32>
    %455 = arith.mulf %450, %454 : vector<2x32xf32>
    %456 = vector.extract_strided_slice %95 {offsets = [26, 0], sizes = [2, 32], strides = [1, 1]} : vector<32x32xi1> to vector<2x32xi1>
    %457 = arith.select %456, %453, %431 : vector<2x32xi1>, vector<2x32xf32>
    %458 = arith.select %456, %455, %432 : vector<2x32xi1>, vector<2x32xf32>
    %cst_49 = arith.constant 0.000000e+00 : f32
    %459 = vector.broadcast %cst_49 : f32 to vector<2x32xf32>
    %460 = arith.select %456, %455, %459 : vector<2x32xi1>, vector<2x32xf32>
    %461 = vector.extract_strided_slice %460 {offsets = [0, 0], sizes = [2, 16], strides = [1, 1]} : vector<2x32xf32> to vector<2x16xf32>
    %462 = vector.extract_strided_slice %460 {offsets = [0, 16], sizes = [2, 16], strides = [1, 1]} : vector<2x32xf32> to vector<2x16xf32>
    %463 = vector.extract_strided_slice %86 {offsets = [28, 0], sizes = [2, 128], strides = [1, 1]} : vector<32x128xf32> to vector<2x128xf32>
    %cst_50 = arith.constant dense<0.000000e+00> : vector<2x128xf32>
    %464 = tpu.matmul %458, %96, %cst_50 {dimension_numbers = #tpu.dot_dimension_numbers<[1], [0], [0], [1], [0, 0, 1, 1], [], []>} : vector<2x32xf32>, vector<32x128xf32>, vector<2x128xf32> -> vector<2x128xf32>
    %465 = arith.addf %463, %464 : vector<2x128xf32>
    %466 = vector.broadcast %46 : vector<1x128xf32> to vector<2x128xf32>
    %467 = arith.mulf %466, %465 : vector<2x128xf32>
    %468 = math.tanh %467 : vector<2x128xf32>
    %469 = vector.broadcast %46 : vector<1x128xf32> to vector<2x128xf32>
    %470 = arith.mulf %469, %468 : vector<2x128xf32>
    %471 = vector.broadcast %49 : vector<1x128xf32> to vector<2x128xf32>
    %472 = arith.addf %471, %470 : vector<2x128xf32>
    %473 = vector.extract_strided_slice %472 {offsets = [0, 0], sizes = [2, 32], strides = [1, 1]} : vector<2x128xf32> to vector<2x32xf32>
    %474 = vector.extract_strided_slice %472 {offsets = [0, 32], sizes = [2, 32], strides = [1, 1]} : vector<2x128xf32> to vector<2x32xf32>
    %475 = vector.extract_strided_slice %472 {offsets = [0, 64], sizes = [2, 32], strides = [1, 1]} : vector<2x128xf32> to vector<2x32xf32>
    %476 = vector.extract_strided_slice %472 {offsets = [0, 96], sizes = [2, 32], strides = [1, 1]} : vector<2x128xf32> to vector<2x32xf32>
    %477 = arith.mulf %474, %457 : vector<2x32xf32>
    %478 = arith.mulf %473, %475 : vector<2x32xf32>
    %479 = arith.addf %477, %478 : vector<2x32xf32>
    %480 = math.tanh %479 : vector<2x32xf32>
    %481 = arith.mulf %476, %480 : vector<2x32xf32>
    %482 = vector.extract_strided_slice %95 {offsets = [28, 0], sizes = [2, 32], strides = [1, 1]} : vector<32x32xi1> to vector<2x32xi1>
    %483 = arith.select %482, %479, %457 : vector<2x32xi1>, vector<2x32xf32>
    %484 = arith.select %482, %481, %458 : vector<2x32xi1>, vector<2x32xf32>
    %cst_51 = arith.constant 0.000000e+00 : f32
    %485 = vector.broadcast %cst_51 : f32 to vector<2x32xf32>
    %486 = arith.select %482, %481, %485 : vector<2x32xi1>, vector<2x32xf32>
    %487 = vector.extract_strided_slice %486 {offsets = [0, 0], sizes = [2, 16], strides = [1, 1]} : vector<2x32xf32> to vector<2x16xf32>
    %488 = vector.extract_strided_slice %486 {offsets = [0, 16], sizes = [2, 16], strides = [1, 1]} : vector<2x32xf32> to vector<2x16xf32>
    %489 = vector.extract_strided_slice %86 {offsets = [30, 0], sizes = [2, 128], strides = [1, 1]} : vector<32x128xf32> to vector<2x128xf32>
    %cst_52 = arith.constant dense<0.000000e+00> : vector<2x128xf32>
    %490 = tpu.matmul %484, %96, %cst_52 {dimension_numbers = #tpu.dot_dimension_numbers<[1], [0], [0], [1], [0, 0, 1, 1], [], []>} : vector<2x32xf32>, vector<32x128xf32>, vector<2x128xf32> -> vector<2x128xf32>
    %491 = arith.addf %489, %490 : vector<2x128xf32>
    %492 = vector.broadcast %46 : vector<1x128xf32> to vector<2x128xf32>
    %493 = arith.mulf %492, %491 : vector<2x128xf32>
    %494 = math.tanh %493 : vector<2x128xf32>
    %495 = vector.broadcast %46 : vector<1x128xf32> to vector<2x128xf32>
    %496 = arith.mulf %495, %494 : vector<2x128xf32>
    %497 = vector.broadcast %49 : vector<1x128xf32> to vector<2x128xf32>
    %498 = arith.addf %497, %496 : vector<2x128xf32>
    %499 = vector.extract_strided_slice %498 {offsets = [0, 0], sizes = [2, 32], strides = [1, 1]} : vector<2x128xf32> to vector<2x32xf32>
    %500 = vector.extract_strided_slice %498 {offsets = [0, 32], sizes = [2, 32], strides = [1, 1]} : vector<2x128xf32> to vector<2x32xf32>
    %501 = vector.extract_strided_slice %498 {offsets = [0, 64], sizes = [2, 32], strides = [1, 1]} : vector<2x128xf32> to vector<2x32xf32>
    %502 = vector.extract_strided_slice %498 {offsets = [0, 96], sizes = [2, 32], strides = [1, 1]} : vector<2x128xf32> to vector<2x32xf32>
    %503 = arith.mulf %500, %483 : vector<2x32xf32>
    %504 = arith.mulf %499, %501 : vector<2x32xf32>
    %505 = arith.addf %503, %504 : vector<2x32xf32>
    %506 = math.tanh %505 : vector<2x32xf32>
    %507 = arith.mulf %502, %506 : vector<2x32xf32>
    %508 = vector.extract_strided_slice %95 {offsets = [30, 0], sizes = [2, 32], strides = [1, 1]} : vector<32x32xi1> to vector<2x32xi1>
    %cst_53 = arith.constant 0.000000e+00 : f32
    %509 = vector.broadcast %cst_53 : f32 to vector<2x32xf32>
    %510 = arith.select %508, %507, %509 : vector<2x32xi1>, vector<2x32xf32>
    %511 = vector.extract_strided_slice %510 {offsets = [0, 0], sizes = [2, 16], strides = [1, 1]} : vector<2x32xf32> to vector<2x16xf32>
    %512 = vector.extract_strided_slice %510 {offsets = [0, 16], sizes = [2, 16], strides = [1, 1]} : vector<2x32xf32> to vector<2x16xf32>
    %513 = tpu.concatenate %123, %149, %175, %201, %227, %253, %279, %305, %331, %357, %383, %409, %435, %461, %487, %511 in 0 : vector<2x16xf32>, vector<2x16xf32>, vector<2x16xf32>, vector<2x16xf32>, vector<2x16xf32>, vector<2x16xf32>, vector<2x16xf32>, vector<2x16xf32>, vector<2x16xf32>, vector<2x16xf32>, vector<2x16xf32>, vector<2x16xf32>, vector<2x16xf32>, vector<2x16xf32>, vector<2x16xf32>, vector<2x16xf32> -> vector<32x16xf32>
    %514 = tpu.concatenate %512, %488, %462, %436, %410, %384, %358, %332, %306, %280, %254, %228, %202, %176, %150, %124 in 0 : vector<2x16xf32>, vector<2x16xf32>, vector<2x16xf32>, vector<2x16xf32>, vector<2x16xf32>, vector<2x16xf32>, vector<2x16xf32>, vector<2x16xf32>, vector<2x16xf32>, vector<2x16xf32>, vector<2x16xf32>, vector<2x16xf32>, vector<2x16xf32>, vector<2x16xf32>, vector<2x16xf32>, vector<2x16xf32> -> vector<32x16xf32>
    %515 = tpu.concatenate %513, %514 in 1 : vector<32x16xf32>, vector<32x16xf32> -> vector<32x32xf32>
    %c0_54 = arith.constant 0 : index
    %c0_55 = arith.constant 0 : index
    %516 = vector.load %arg5[%c0_54, %c0_55] : memref<32x4xf32, #tpu.memory_space<vmem>>, vector<32x4xf32>
    %cst_56 = arith.constant dense<0.000000e+00> : vector<32x4xf32>
    %517 = tpu.matmul %515, %516, %cst_56 {dimension_numbers = #tpu.dot_dimension_numbers<[1], [0], [0], [1], [0, 0, 1, 1], [], []>} : vector<32x32xf32>, vector<32x4xf32>, vector<32x4xf32> -> vector<32x4xf32>
    %cst_57 = arith.constant 0.000000e+00 : f32
    %518 = vector.broadcast %cst_57 : f32 to vector<32x1xf32>
    %519 = arith.cmpf ogt, %16, %518 : vector<32x1xf32>
    %cst_58 = arith.constant -1.000000e+30 : f32
    %520 = vector.shape_cast %519 : vector<32x1xi1> to vector<32x1xi1>
    %521 = vector.broadcast %520 : vector<32x1xi1> to vector<32x4xi1>
    %522 = vector.broadcast %cst_58 : f32 to vector<32x4xf32>
    %523 = arith.select %521, %517, %522 : vector<32x4xi1>, vector<32x4xf32>
    %cst_59 = arith.constant dense<0xFF800000> : vector<4xf32>
    %524 = vector.multi_reduction <maximumf>, %523, %cst_59 [0] : vector<32x4xf32> to vector<4xf32>
    %525 = vector.shape_cast %524 : vector<4xf32> to vector<1x4xf32>
    %526 = vector.broadcast %525 : vector<1x4xf32> to vector<32x4xf32>
    %527 = arith.subf %523, %526 : vector<32x4xf32>
    %528 = math.exp %527 : vector<32x4xf32>
    %529 = tpu.iota {dimensions = array<i32: 0>} : vector<32x32xi32>
    %530 = tpu.iota {dimensions = array<i32: 1>} : vector<32x32xi32>
    %c2_i32 = arith.constant 2 : i32
    %c0_i32_60 = arith.constant 0 : i32
    %531 = arith.cmpi eq, %c2_i32, %c0_i32_60 : i32
    %c1_i32_61 = arith.constant 1 : i32
    %532 = arith.select %531, %c1_i32_61, %c2_i32 : i32
    %533 = vector.broadcast %532 : i32 to vector<32x32xi32>
    %534 = arith.remsi %529, %533 : vector<32x32xi32>
    %c0_i32_62 = arith.constant 0 : i32
    %535 = vector.broadcast %c0_i32_62 : i32 to vector<32x32xi32>
    %536 = arith.cmpi ne, %534, %535 : vector<32x32xi32>
    %c0_i32_63 = arith.constant 0 : i32
    %537 = vector.broadcast %c0_i32_63 : i32 to vector<32x32xi32>
    %538 = arith.cmpi slt, %534, %537 : vector<32x32xi32>
    %c0_i32_64 = arith.constant 0 : i32
    %539 = arith.cmpi slt, %532, %c0_i32_64 : i32
    %540 = vector.broadcast %539 : i1 to vector<32x32xi1>
    %541 = vector.broadcast %540 : vector<32x32xi1> to vector<32x32xi1>
    %542 = arith.xori %538, %541 : vector<32x32xi1>
    %543 = arith.andi %542, %536 : vector<32x32xi1>
    %544 = vector.broadcast %532 : i32 to vector<32x32xi32>
    %545 = arith.addi %534, %544 : vector<32x32xi32>
    %546 = arith.select %543, %545, %534 : vector<32x32xi1>, vector<32x32xi32>
    %c2_i32_65 = arith.constant 2 : i32
    %c0_i32_66 = arith.constant 0 : i32
    %547 = arith.cmpi eq, %c2_i32_65, %c0_i32_66 : i32
    %c1_i32_67 = arith.constant 1 : i32
    %548 = arith.select %547, %c1_i32_67, %c2_i32_65 : i32
    %549 = vector.broadcast %548 : i32 to vector<32x32xi32>
    %550 = arith.remsi %530, %549 : vector<32x32xi32>
    %c0_i32_68 = arith.constant 0 : i32
    %551 = vector.broadcast %c0_i32_68 : i32 to vector<32x32xi32>
    %552 = arith.cmpi ne, %550, %551 : vector<32x32xi32>
    %c0_i32_69 = arith.constant 0 : i32
    %553 = vector.broadcast %c0_i32_69 : i32 to vector<32x32xi32>
    %554 = arith.cmpi slt, %550, %553 : vector<32x32xi32>
    %c0_i32_70 = arith.constant 0 : i32
    %555 = arith.cmpi slt, %548, %c0_i32_70 : i32
    %556 = vector.broadcast %555 : i1 to vector<32x32xi1>
    %557 = vector.broadcast %556 : vector<32x32xi1> to vector<32x32xi1>
    %558 = arith.xori %554, %557 : vector<32x32xi1>
    %559 = arith.andi %558, %552 : vector<32x32xi1>
    %560 = vector.broadcast %548 : i32 to vector<32x32xi32>
    %561 = arith.addi %550, %560 : vector<32x32xi32>
    %562 = arith.select %559, %561, %550 : vector<32x32xi1>, vector<32x32xi32>
    %563 = arith.cmpi eq, %546, %562 : vector<32x32xi32>
    %564 = arith.extui %563 : vector<32x32xi1> to vector<32x32xi32>
    %565 = arith.sitofp %564 : vector<32x32xi32> to vector<32x32xf32>
    %cst_71 = arith.constant dense<0.000000e+00> : vector<32x4xf32>
    %566 = tpu.matmul %565, %528, %cst_71 {dimension_numbers = #tpu.dot_dimension_numbers<[1], [0], [0], [1], [0, 0, 1, 1], [], []>} : vector<32x32xf32>, vector<32x4xf32>, vector<32x4xf32> -> vector<32x4xf32>
    %567 = arith.divf %528, %566 : vector<32x4xf32>
    %c0_72 = arith.constant 0 : index
    %c0_73 = arith.constant 0 : index
    %568 = vector.load %arg6[%c0_72, %c0_73] : memref<32x32xf32, #tpu.memory_space<vmem>>, vector<32x32xf32>
    %cst_74 = arith.constant dense<0.000000e+00> : vector<32x32xf32>
    %569 = tpu.matmul %515, %568, %cst_74 {dimension_numbers = #tpu.dot_dimension_numbers<[1], [0], [0], [1], [0, 0, 1, 1], [], []>} : vector<32x32xf32>, vector<32x32xf32>, vector<32x32xf32> -> vector<32x32xf32>
    %cst_75 = arith.constant 0.000000e+00 : f32
    %570 = vector.broadcast %cst_75 : f32 to vector<32x8xf32>
    %571 = vector.extract_strided_slice %567 {offsets = [0, 0], sizes = [32, 1], strides = [1, 1]} : vector<32x4xf32> to vector<32x1xf32>
    %572 = vector.extract_strided_slice %569 {offsets = [0, 0], sizes = [32, 8], strides = [1, 1]} : vector<32x32xf32> to vector<32x8xf32>
    %573 = vector.broadcast %571 : vector<32x1xf32> to vector<32x8xf32>
    %574 = arith.mulf %573, %572 : vector<32x8xf32>
    %575 = arith.addf %570, %574 : vector<32x8xf32>
    %576 = vector.extract_strided_slice %567 {offsets = [0, 1], sizes = [32, 1], strides = [1, 1]} : vector<32x4xf32> to vector<32x1xf32>
    %577 = vector.extract_strided_slice %569 {offsets = [0, 8], sizes = [32, 8], strides = [1, 1]} : vector<32x32xf32> to vector<32x8xf32>
    %578 = vector.broadcast %576 : vector<32x1xf32> to vector<32x8xf32>
    %579 = arith.mulf %578, %577 : vector<32x8xf32>
    %580 = arith.addf %575, %579 : vector<32x8xf32>
    %581 = vector.extract_strided_slice %567 {offsets = [0, 2], sizes = [32, 1], strides = [1, 1]} : vector<32x4xf32> to vector<32x1xf32>
    %582 = vector.extract_strided_slice %569 {offsets = [0, 16], sizes = [32, 8], strides = [1, 1]} : vector<32x32xf32> to vector<32x8xf32>
    %583 = vector.broadcast %581 : vector<32x1xf32> to vector<32x8xf32>
    %584 = arith.mulf %583, %582 : vector<32x8xf32>
    %585 = arith.addf %580, %584 : vector<32x8xf32>
    %586 = vector.extract_strided_slice %567 {offsets = [0, 3], sizes = [32, 1], strides = [1, 1]} : vector<32x4xf32> to vector<32x1xf32>
    %587 = vector.extract_strided_slice %569 {offsets = [0, 24], sizes = [32, 8], strides = [1, 1]} : vector<32x32xf32> to vector<32x8xf32>
    %588 = vector.broadcast %586 : vector<32x1xf32> to vector<32x8xf32>
    %589 = arith.mulf %588, %587 : vector<32x8xf32>
    %590 = arith.addf %585, %589 : vector<32x8xf32>
    %591 = tpu.iota {dimensions = array<i32: 0>} : vector<2x32xi32>
    %592 = tpu.iota {dimensions = array<i32: 1>} : vector<2x32xi32>
    %c2_i32_76 = arith.constant 2 : i32
    %c0_i32_77 = arith.constant 0 : i32
    %593 = arith.cmpi eq, %c2_i32_76, %c0_i32_77 : i32
    %c1_i32_78 = arith.constant 1 : i32
    %594 = arith.select %593, %c1_i32_78, %c2_i32_76 : i32
    %595 = vector.broadcast %594 : i32 to vector<2x32xi32>
    %596 = arith.remsi %592, %595 : vector<2x32xi32>
    %c0_i32_79 = arith.constant 0 : i32
    %597 = vector.broadcast %c0_i32_79 : i32 to vector<2x32xi32>
    %598 = arith.cmpi ne, %596, %597 : vector<2x32xi32>
    %c0_i32_80 = arith.constant 0 : i32
    %599 = vector.broadcast %c0_i32_80 : i32 to vector<2x32xi32>
    %600 = arith.cmpi slt, %596, %599 : vector<2x32xi32>
    %c0_i32_81 = arith.constant 0 : i32
    %601 = arith.cmpi slt, %594, %c0_i32_81 : i32
    %602 = vector.broadcast %601 : i1 to vector<2x32xi1>
    %603 = vector.broadcast %602 : vector<2x32xi1> to vector<2x32xi1>
    %604 = arith.xori %600, %603 : vector<2x32xi1>
    %605 = arith.andi %604, %598 : vector<2x32xi1>
    %606 = vector.broadcast %594 : i32 to vector<2x32xi32>
    %607 = arith.addi %596, %606 : vector<2x32xi32>
    %608 = arith.select %605, %607, %596 : vector<2x32xi1>, vector<2x32xi32>
    %609 = arith.cmpi eq, %591, %608 : vector<2x32xi32>
    %610 = arith.extui %609 : vector<2x32xi1> to vector<2x32xi32>
    %611 = arith.sitofp %610 : vector<2x32xi32> to vector<2x32xf32>
    %cst_82 = arith.constant dense<0.000000e+00> : vector<2x8xf32>
    %612 = tpu.matmul %611, %590, %cst_82 {dimension_numbers = #tpu.dot_dimension_numbers<[1], [0], [0], [1], [0, 0, 1, 1], [], []>} : vector<2x32xf32>, vector<32x8xf32>, vector<2x8xf32> -> vector<2x8xf32>
    %c0_83 = arith.constant 0 : index
    %c0_84 = arith.constant 0 : index
    %613 = vector.load %arg7[%c0_83, %c0_84] : memref<1x8xf32, #tpu.memory_space<vmem>>, vector<1x8xf32>
    %614 = vector.broadcast %613 : vector<1x8xf32> to vector<2x8xf32>
    %615 = arith.addf %612, %614 : vector<2x8xf32>
    %c0_85 = arith.constant 0 : index
    %c0_86 = arith.constant 0 : index
    %616 = vector.load %arg8[%c0_85, %c0_86] : memref<2x8xf32, #tpu.memory_space<vmem>>, vector<2x8xf32>
    tpu.vector_store %arg8[%c0_85, %c0_86], %615 {strides = array<i32>} : memref<2x8xf32, #tpu.memory_space<vmem>>, vector<2x8xf32>,
    return
  }
}

</mosaic_0001>

<llo_original>
// kernel: forward_pallas.1
$region0: #{forward_pallas.1}
  #allocation0 [shape = 'u32[]', space=smem, size = 0x4, offset = 0x4, fixed_abs, tag = 'smem constant byte address 0x4 - core index']
  #allocation1 [shape = 'u32[72,128]{1,0:T(1,128)}', space=vmem, size = 0x9000, scoped, tag = 'internal scratch']
  %s0 = inlined_call_operand.vmem [shape: s32[32,1], index: 0, kind: input, shape index: {}]
  %s1 = inlined_call_operand.vmem [shape: f32[128,16], index: 1, kind: input, shape index: {}]
  %s2 = inlined_call_operand.vmem [shape: f32[16,128], index: 2, kind: input, shape index: {}]
  %s3 = inlined_call_operand.vmem [shape: f32[1,128], index: 3, kind: input, shape index: {}]
  %s4 = inlined_call_operand.vmem [shape: f32[32,128], index: 4, kind: input, shape index: {}]
  %s5 = inlined_call_operand.vmem [shape: f32[32,4], index: 5, kind: input, shape index: {}]
  %s6 = inlined_call_operand.vmem [shape: f32[32,32], index: 6, kind: input, shape index: {}]
  %s7 = inlined_call_operand.vmem [shape: f32[1,8], index: 7, kind: input, shape index: {}]
  %s8 = inlined_call_operand.hbm [shape: f32[2,8], index: 8, kind: output, shape index: {}]
  %s9 = sld [smem:[#allocation0]]
  $region42: #{forward_pallas.1} parent=0
    _
  %s11 = ssub.s32 1, %s9
  %s12 = scalar_select 0, %s11, %s9
  $region1: #{forward_pallas.1} parent=0
    #allocation2 [shape = 'u8[1024]{0}', space=vmem, size = 0x400, scoped, tag = 'output window, operand 0, single buffered']
    #allocation3 [shape = 's32[1]{0}', space=sflag, size = 0x4, scoped, tag = 'scoped memory for forward_pallas.1']
    %13 = vsyncpa [#allocation3], 0
    // Predicated region
    $region2: #{forward_pallas.1} parent=1 // pred_check
      _
    $region3: #{forward_pallas.1} parent=1 // pred_check_branch
      %15 = sbr.rel (0) target = $region5
    $region4: #{forward_pallas.1} parent=1 // pred_region
      _
    $region5: #{forward_pallas.1} parent=1 // pred_fallthru
      _
    // Predicated region
    $region6: #{forward_pallas.1} parent=1 // pred_check
      _
    $region7: #{forward_pallas.1} parent=1 // pred_check_branch
      %17 = sbr.rel (0) target = $region9
    $region8: #{forward_pallas.1} parent=1 // pred_region
      _
    $region9: #{forward_pallas.1} parent=1 // pred_fallthru
      _
    // Predicated region
    $region10: #{forward_pallas.1} parent=1 // pred_check
      _
    $region11: #{forward_pallas.1} parent=1 // pred_check_branch
      %19 = sbr.rel (0) target = $region13
    $region12: #{forward_pallas.1} parent=1 // pred_region
      _
    $region13: #{forward_pallas.1} parent=1 // pred_fallthru
      _
    // Predicated region
    $region14: #{forward_pallas.1} parent=1 // pred_check
      _
    $region15: #{forward_pallas.1} parent=1 // pred_check_branch
      %21 = sbr.rel (0) target = $region17
    $region16: #{forward_pallas.1} parent=1 // pred_region
      _
    $region17: #{forward_pallas.1} parent=1 // pred_fallthru
      _
    // Predicated region
    $region18: #{forward_pallas.1} parent=1 // pred_check
      _
    $region19: #{forward_pallas.1} parent=1 // pred_check_branch
      %23 = sbr.rel (0) target = $region21
    $region20: #{forward_pallas.1} parent=1 // pred_region
      _
    $region21: #{forward_pallas.1} parent=1 // pred_fallthru
      _
    // Predicated region
    $region22: #{forward_pallas.1} parent=1 // pred_check
      _
    $region23: #{forward_pallas.1} parent=1 // pred_check_branch
      %25 = sbr.rel (0) target = $region25
    $region24: #{forward_pallas.1} parent=1 // pred_region
      _
    $region25: #{forward_pallas.1} parent=1 // pred_fallthru
      _
    // Predicated region
    $region26: #{forward_pallas.1} parent=1 // pred_check
      _
    $region27: #{forward_pallas.1} parent=1 // pred_check_branch
      %27 = sbr.rel (0) target = $region29
    $region28: #{forward_pallas.1} parent=1 // pred_region
      _
    $region29: #{forward_pallas.1} parent=1 // pred_fallthru
      _
    // Predicated region
    $region30: #{forward_pallas.1} parent=1 // pred_check
      _
    $region31: #{forward_pallas.1} parent=1 // pred_check_branch
      %29 = sbr.rel (0) target = $region33
    $region32: #{forward_pallas.1} parent=1 // pred_region
      _
    $region33: #{forward_pallas.1} parent=1 // pred_fallthru
      _
    %v30 = vld [vmem:[%s0] sm:$0xff]
    %v31 = vld [vmem:[%s0 + $0x8] sm:$0xff]
    %v32 = vld [vmem:[%s0 + $0x10] sm:$0xff]
    %v33 = vld [vmem:[%s0 + $0x18] sm:$0xff]
    %v34 = vlaneseq
    %v35 = vand.u32 %v34, 127
    %36 = vset.pattern.permute.xlu0 0
    %37 = vperm.xlu0 %36, %v30
    %v38 = vpop.permute.xlu0 %37
    %39 = vset.pattern.permute.xlu0 0
    %40 = vperm.xlu0 %39, %v31
    %v41 = vpop.permute.xlu0 %40
    %42 = vset.pattern.permute.xlu0 0
    %43 = vperm.xlu0 %42, %v32
    %v44 = vpop.permute.xlu0 %43
    %45 = vset.pattern.permute.xlu0 0
    %46 = vperm.xlu0 %45, %v33
    %v47 = vpop.permute.xlu0 %46
    %vm48 = vcmp.eq.s32.totalorder %v35, %v38
    %vm49 = vcmp.eq.s32.totalorder %v35, %v41
    %vm50 = vcmp.eq.s32.totalorder %v35, %v44
    %vm51 = vcmp.eq.s32.totalorder %v35, %v47
    %v52 = vsel %vm48, 1, 0
    %v53 = vsel %vm49, 1, 0
    %v54 = vsel %vm50, 1, 0
    %v55 = vsel %vm51, 1, 0
    %v56 = vcvt.s32.f32 %v52
    %v57 = vcvt.s32.f32 %v53
    %v58 = vcvt.s32.f32 %v54
    %v59 = vcvt.s32.f32 %v55
    %v60 = vld [vmem:[%s1] sm:$0xff]
    %v61 = vld [vmem:[%s1 + $0x8] sm:$0xff]
    %v62 = vld [vmem:[%s1 + $0x10] sm:$0xff]
    %v63 = vld [vmem:[%s1 + $0x18] sm:$0xff]
    %v64 = vld [vmem:[%s1 + $0x20] sm:$0xff]
    %v65 = vld [vmem:[%s1 + $0x28] sm:$0xff]
    %v66 = vld [vmem:[%s1 + $0x30] sm:$0xff]
    %v67 = vld [vmem:[%s1 + $0x38] sm:$0xff]
    %v68 = vld [vmem:[%s1 + $0x40] sm:$0xff]
    %v69 = vld [vmem:[%s1 + $0x48] sm:$0xff]
    %v70 = vld [vmem:[%s1 + $0x50] sm:$0xff]
    %v71 = vld [vmem:[%s1 + $0x58] sm:$0xff]
    %v72 = vld [vmem:[%s1 + $0x60] sm:$0xff]
    %v73 = vld [vmem:[%s1 + $0x68] sm:$0xff]
    %v74 = vld [vmem:[%s1 + $0x70] sm:$0xff]
    %v75 = vld [vmem:[%s1 + $0x78] sm:$0xff]
    %76 = vmatpush.msra.mxu0 %v75
    %77 = vmatpush.msra.mxu0 %v74
    %78 = vmatpush.msra.mxu0 %v73
    %79 = vmatpush.msra.mxu0 %v72
    %80 = vmatpush.msra.mxu0 %v71
    %81 = vmatpush.msra.mxu0 %v70
    %82 = vmatpush.msra.mxu0 %v69
    %83 = vmatpush.msra.mxu0 %v68
    %84 = vmatpush.msra.mxu0 %v67
    %85 = vmatpush.msra.mxu0 %v66
    %86 = vmatpush.msra.mxu0 %v65
    %87 = vmatpush.msra.mxu0 %v64
    %88 = vmatpush.msra.mxu0 %v63
    %89 = vmatpush.msra.mxu0 %v62
    %90 = vmatpush.msra.mxu0 %v61
    %91 = vmatpush.msra.mxu0 %v60
    %92 = vmatmul.f32.gmra.mxu0 %v56
    %v93 = vpop.f32.mrf.mxu0
    %v94 = vadd.f32 0.0, %v93
    %95 = vmatmul.f32.gmra.mxu0 %v57
    %v96 = vpop.f32.mrf.mxu0
    %v97 = vadd.f32 0.0, %v96
    %98 = vmatmul.f32.gmra.mxu0 %v58
    %v99 = vpop.f32.mrf.mxu0
    %v100 = vadd.f32 0.0, %v99
    %101 = vmatmul.f32.gmra.mxu0 %v59
    %v102 = vpop.f32.mrf.mxu0
    %v103 = vadd.f32 0.0, %v102
    %104 = vdwg.mxu0
    %v105 = vld [vmem:[%s2] sm:$0xff]
    %v106 = vld [vmem:[%s2 + $0x8] sm:$0xff]
    %v107 = vld [vmem:[%s3] sm:$0x1]
    %v109 = vperm.slane %v107, 0
    %vm111 = vcmask 130048
    %v113 = vsel %vm111, %v94, 0
    %v116 = vsel %vm111, %v97, 0
    %v119 = vsel %vm111, %v100, 0
    %v122 = vsel %vm111, %v103, 0
    %124 = vmatpush.msra.mxu0 0.0
    %125 = vmatpush.msra.mxu0 0.0
    %126 = vmatpush.msra.mxu0 0.0
    %127 = vmatpush.msra.mxu0 0.0
    %128 = vmatpush.msra.mxu0 0.0
    %129 = vmatpush.msra.mxu0 0.0
    %130 = vmatpush.msra.mxu0 0.0
    %131 = vmatpush.msra.mxu0 0.0
    %132 = vmatpush.msra.mxu0 0.0
    %133 = vmatpush.msra.mxu0 0.0
    %134 = vmatpush.msra.mxu0 0.0
    %135 = vmatpush.msra.mxu0 0.0
    %136 = vmatpush.msra.mxu0 0.0
    %137 = vmatpush.msra.mxu0 0.0
    %138 = vmatpush.msra.mxu0 %v106
    %139 = vmatpush.msra.mxu0 %v105
    %140 = vmatmul.f32.gmra.mxu0 %v113
    %v141 = vpop.f32.mrf.mxu0
    %v142 = vadd.f32 %v109, %v141
    %143 = vmatmul.f32.gmra.mxu0 %v116
    %v144 = vpop.f32.mrf.mxu0
    %v145 = vadd.f32 %v109, %v144
    %146 = vmatmul.f32.gmra.mxu0 %v119
    %v147 = vpop.f32.mrf.mxu0
    %v148 = vadd.f32 %v109, %v147
    %149 = vmatmul.f32.gmra.mxu0 %v122
    %v150 = vpop.f32.mrf.mxu0
    %v151 = vadd.f32 %v109, %v150
    %152 = vdwg.mxu0
    %vm153 = vcmp.ne.s32.totalorder %v30, 0
    %vm154 = vcmp.ne.s32.totalorder %v31, 0
    %vm155 = vcmp.ne.s32.totalorder %v32, 0
    %vm156 = vcmp.ne.s32.totalorder %v33, 0
    %v157 = vsel %vm153, 1, 0
    %v158 = vsel %vm154, 1, 0
    %v159 = vsel %vm155, 1, 0
    %v160 = vsel %vm156, 1, 0
    %v161 = vcvt.s32.f32 %v157
    %v162 = vcvt.s32.f32 %v158
    %v163 = vcvt.s32.f32 %v159
    %v164 = vcvt.s32.f32 %v160
    %vm165 = vcmp.lt.s32.totalorder %v35, 0
    %v166 = vsub.s32 0, %v35
    %v167 = vsel %vm165, %v166, %v35
    %v168 = vshrl.u32 %v167, 5
    %v169 = vand.u32 %v167, 31
    %v170 = vsub.s32 0, %v169
    %v171 = vsel %vm165, %v170, %v169
    %vm172 = vcmp.ne.s32.totalorder %v171, 0
    %vm173 = vcmp.lt.s32.totalorder %v171, 0
    %vm174 = vmand %vm173, %vm172
    %v175 = vadd.s32 %v171, 32
    %v176 = vsel %vm174, %v175, %v171
    %vm177 = vcmp.lt.s32.totalorder %v176, 16
    %vm178 = vcmp.ge.s32.totalorder %v35, 64
    %vm179 = vcmp.lt.s32.totalorder %v35, 96
    %vm180 = vmand %vm178, %vm179
    %vm181 = vcmp.lt.s32.totalorder %v35, 16
    %v182 = vsel %vm180, 1.0, 0.5
    %v183 = vsel %vm180, 0.0, 0.5
    %v185 = vrot.slane %v151, 6
    %v187 = vrot.slane %v151, 2
    %v190 = vrot.slane %v148, 6
    %v192 = vrot.slane %v148, 2
    %v195 = vrot.slane %v145, 6
    %v197 = vrot.slane %v145, 2
    %v200 = vrot.slane %v142, 6
    %v202 = vrot.slane %v142, 2
    %vm204 = vcmask 1041408
    %v205 = vsel %vm204, %v185, %v187
    %vm206 = vcmask 1043456
    %v207 = vsel %vm206, %v205, %v185
    %vm208 = vcmask 1045504
    %v209 = vsel %vm208, %v207, %v187
    %v210 = vsel %vm204, %v190, %v192
    %v211 = vsel %vm206, %v210, %v190
    %v212 = vsel %vm208, %v211, %v192
    %v213 = vsel %vm204, %v195, %v197
    %v214 = vsel %vm206, %v213, %v195
    %v215 = vsel %vm208, %v214, %v197
    %v216 = vsel %vm204, %v200, %v202
    %v217 = vsel %vm206, %v216, %v200
    %v218 = vsel %vm208, %v217, %v202
    %v220 = vrot.slane %v164, 6
    %v222 = vrot.slane %v164, 2
    %v225 = vrot.slane %v163, 6
    %v227 = vrot.slane %v163, 2
    %v230 = vrot.slane %v162, 6
    %v232 = vrot.slane %v162, 2
    %v235 = vrot.slane %v161, 6
    %v237 = vrot.slane %v161, 2
    %v239 = vsel %vm204, %v220, %v222
    %v240 = vsel %vm206, %v239, %v220
    %v241 = vsel %vm208, %v240, %v222
    %v242 = vsel %vm204, %v225, %v227
    %v243 = vsel %vm206, %v242, %v225
    %v244 = vsel %vm208, %v243, %v227
    %v245 = vsel %vm204, %v230, %v232
    %v246 = vsel %vm206, %v245, %v230
    %v247 = vsel %vm208, %v246, %v232
    %v248 = vsel %vm204, %v235, %v237
    %v249 = vsel %vm206, %v248, %v235
    %v250 = vsel %vm208, %v249, %v237
    %v251 = vsel %vm177, 1, 0
    %vm252 = vcmp.eq.s32.totalorder %v251, 1
    %v253 = vsel %vm252, %v142, %v209
    %v254 = vsel %vm252, %v145, %v212
    %v255 = vsel %vm252, %v148, %v215
    %v256 = vsel %vm252, %v151, %v218
    %v257 = vsel %vm181, 1, 0
    %vm258 = vcmp.eq.s32.totalorder %v257, 1
    %259 = vset.pattern.permute.xlu0 0
    %260 = vperm.xlu0 %259, %v161
    %v261 = vpop.permute.xlu0 %260
    %263 = vset.pattern.permute.xlu0 0
    %264 = vperm.xlu0 %263, %v162
    %v265 = vpop.permute.xlu0 %264
    %267 = vset.pattern.permute.xlu0 0
    %268 = vperm.xlu0 %267, %v163
    %v269 = vpop.permute.xlu0 %268
    %271 = vset.pattern.permute.xlu0 0
    %272 = vperm.xlu0 %271, %v164
    %v273 = vpop.permute.xlu0 %272
    %276 = vset.pattern.permute.xlu0 0
    %277 = vperm.xlu0 %276, %v241
    %v278 = vpop.permute.xlu0 %277
    %281 = vset.pattern.permute.xlu0 0
    %282 = vperm.xlu0 %281, %v244
    %v283 = vpop.permute.xlu0 %282
    %286 = vset.pattern.permute.xlu0 0
    %287 = vperm.xlu0 %286, %v247
    %v288 = vpop.permute.xlu0 %287
    %291 = vset.pattern.permute.xlu0 0
    %292 = vperm.xlu0 %291, %v250
    %v293 = vpop.permute.xlu0 %292
    %v295 = vsel %vm258, %v261, %v278
    %v296 = vsel %vm258, %v265, %v283
    %v297 = vsel %vm258, %v269, %v288
    %v298 = vsel %vm258, %v273, %v293
    %vm299 = vcmp.gt.f32.partialorder %v295, 0.0
    %vm300 = vcmp.gt.f32.partialorder %v296, 0.0
    %vm301 = vcmp.gt.f32.partialorder %v297, 0.0
    %vm302 = vcmp.gt.f32.partialorder %v298, 0.0
    %v303 = vld [vmem:[%s4] sm:$0xff]
    %v304 = vld [vmem:[%s4 + $0x8] sm:$0xff]
    %v305 = vld [vmem:[%s4 + $0x10] sm:$0xff]
    %v306 = vld [vmem:[%s4 + $0x18] sm:$0xff]
    %vm307 = vcmask 261120
    %v309 = vsel %vm307, 0.0, 0
    %311 = vmatpush.msra.mxu0 0.0
    %312 = vmatpush.msra.mxu0 0.0
    %313 = vmatpush.msra.mxu0 0.0
    %314 = vmatpush.msra.mxu0 0.0
    %315 = vmatpush.msra.mxu0 0.0
    %316 = vmatpush.msra.mxu0 0.0
    %317 = vmatpush.msra.mxu0 0.0
    %318 = vmatpush.msra.mxu0 0.0
    %319 = vmatpush.msra.mxu0 0.0
    %320 = vmatpush.msra.mxu0 0.0
    %321 = vmatpush.msra.mxu0 0.0
    %322 = vmatpush.msra.mxu0 0.0
    %323 = vmatpush.msra.mxu0 %v306
    %324 = vmatpush.msra.mxu0 %v305
    %325 = vmatpush.msra.mxu0 %v304
    %326 = vmatpush.msra.mxu0 %v303
    %327 = vmatmul.f32.gmra.mxu0 %v309
    %v328 = vpop.f32.mrf.mxu0
    %v329 = vadd.f32 0.0, %v328
    %330 = vdwg.mxu0
    %v331 = vadd.f32 %v253, %v329
    %v332 = vmul.f32 %v182, %v331
    %v333 = vtanh.pop %v332
    %v334 = vmul.f32 %v182, %v333
    %v335 = vadd.f32 %v183, %v334
    %v336 = vmul.f32 %v335, 0.0
    %338 = vrot.lane.b32.xlu0 %v335, 64
    %v339 = vpop.permute.xlu0 %338
    %v341 = vmul.f32 %v335, %v339
    %343 = vrot.lane.b32.xlu0 %v341, 32
    %v344 = vpop.permute.xlu0 %343
    %v346 = vadd.f32 %v336, %v344
    %v347 = vtanh.pop %v346
    %349 = vrot.lane.b32.xlu0 %v347, 64
    %v350 = vpop.permute.xlu0 %349
    %v352 = vmul.f32 %v335, %v350
    %354 = vrot.lane.b32.xlu0 %v346, 96
    %v355 = vpop.permute.xlu0 %354
    %v357 = vsel %vm299, %v355, 0.0
    %359 = vrot.lane.b32.xlu0 %v352, 32
    %v360 = vpop.permute.xlu0 %359
    %v362 = vsel %vm299, %v360, 0.0
    %v364 = vsel %vm307, %v362, 0
    %366 = vmatpush.msra.mxu0 0.0
    %367 = vmatpush.msra.mxu0 0.0
    %368 = vmatpush.msra.mxu0 0.0
    %369 = vmatpush.msra.mxu0 0.0
    %370 = vmatpush.msra.mxu0 0.0
    %371 = vmatpush.msra.mxu0 0.0
    %372 = vmatpush.msra.mxu0 0.0
    %373 = vmatpush.msra.mxu0 0.0
    %374 = vmatpush.msra.mxu0 0.0
    %375 = vmatpush.msra.mxu0 0.0
    %376 = vmatpush.msra.mxu0 0.0
    %377 = vmatpush.msra.mxu0 0.0
    %378 = vmatpush.msra.mxu0 %v306
    %379 = vmatpush.msra.mxu0 %v305
    %380 = vmatpush.msra.mxu0 %v304
    %381 = vmatpush.msra.mxu0 %v303
    %382 = vmatmul.f32.gmra.mxu0 %v364
    %v383 = vpop.f32.mrf.mxu0
    %v384 = vadd.f32 0.0, %v383
    %385 = vdwg.mxu0
    %v387 = vrot.slane %v384, 6
    %v389 = vadd.f32 %v253, %v387
    %v390 = vmul.f32 %v182, %v389
    %v391 = vtanh.pop %v390
    %v392 = vmul.f32 %v182, %v391
    %v393 = vadd.f32 %v183, %v392
    %v395 = vrot.slane %v357, 6
    %396 = vrot.lane.b32.xlu0 %v395, 32
    %v397 = vpop.permute.xlu0 %396
    %v399 = vmul.f32 %v393, %v397
    %401 = vrot.lane.b32.xlu0 %v393, 64
    %v402 = vpop.permute.xlu0 %401
    %v404 = vmul.f32 %v393, %v402
    %406 = vrot.lane.b32.xlu0 %v404, 32
    %v407 = vpop.permute.xlu0 %406
    %v409 = vadd.f32 %v399, %v407
    %v410 = vtanh.pop %v409
    %412 = vrot.lane.b32.xlu0 %v410, 64
    %v413 = vpop.permute.xlu0 %412
    %v415 = vmul.f32 %v393, %v413
    %417 = vrot.lane.b32.xlu0 %v409, 96
    %v418 = vpop.permute.xlu0 %417
    %v421 = vsel %vm299, %v418, %v395
    %423 = vrot.lane.b32.xlu0 %v415, 32
    %v424 = vpop.permute.xlu0 %423
    %v426 = vrot.slane %v362, 6
    %v428 = vsel %vm299, %v424, %v426
    %v429 = vsel %vm299, %v424, 0.0
    %v431 = vrot.slane %v428, 2
    %v432 = vsel %vm307, %v431, 0
    %434 = vmatpush.msra.mxu0 0.0
    %435 = vmatpush.msra.mxu0 0.0
    %436 = vmatpush.msra.mxu0 0.0
    %437 = vmatpush.msra.mxu0 0.0
    %438 = vmatpush.msra.mxu0 0.0
    %439 = vmatpush.msra.mxu0 0.0
    %440 = vmatpush.msra.mxu0 0.0
    %441 = vmatpush.msra.mxu0 0.0
    %442 = vmatpush.msra.mxu0 0.0
    %443 = vmatpush.msra.mxu0 0.0
    %444 = vmatpush.msra.mxu0 0.0
    %445 = vmatpush.msra.mxu0 0.0
    %446 = vmatpush.msra.mxu0 %v306
    %447 = vmatpush.msra.mxu0 %v305
    %448 = vmatpush.msra.mxu0 %v304
    %449 = vmatpush.msra.mxu0 %v303
    %450 = vmatmul.f32.gmra.mxu0 %v432
    %v451 = vpop.f32.mrf.mxu0
    %v452 = vadd.f32 0.0, %v451
    %453 = vdwg.mxu0
    %v455 = vrot.slane %v452, 4
    %v457 = vadd.f32 %v253, %v455
    %v458 = vmul.f32 %v182, %v457
    %v459 = vtanh.pop %v458
    %v460 = vmul.f32 %v182, %v459
    %v461 = vadd.f32 %v183, %v460
    %v463 = vrot.slane %v421, 6
    %464 = vrot.lane.b32.xlu0 %v463, 32
    %v465 = vpop.permute.xlu0 %464
    %v467 = vmul.f32 %v461, %v465
    %469 = vrot.lane.b32.xlu0 %v461, 64
    %v470 = vpop.permute.xlu0 %469
    %v472 = vmul.f32 %v461, %v470
    %474 = vrot.lane.b32.xlu0 %v472, 32
    %v475 = vpop.permute.xlu0 %474
    %v477 = vadd.f32 %v467, %v475
    %v478 = vtanh.pop %v477
    %480 = vrot.lane.b32.xlu0 %v478, 64
    %v481 = vpop.permute.xlu0 %480
    %v483 = vmul.f32 %v461, %v481
    %485 = vrot.lane.b32.xlu0 %v477, 96
    %v486 = vpop.permute.xlu0 %485
    %v489 = vsel %vm299, %v486, %v463
    %491 = vrot.lane.b32.xlu0 %v483, 32
    %v492 = vpop.permute.xlu0 %491
    %v494 = vrot.slane %v428, 6
    %v496 = vsel %vm299, %v492, %v494
    %v497 = vsel %vm299, %v492, 0.0
    %v499 = vrot.slane %v496, 4
    %v500 = vsel %vm307, %v499, 0
    %502 = vmatpush.msra.mxu0 0.0
    %503 = vmatpush.msra.mxu0 0.0
    %504 = vmatpush.msra.mxu0 0.0
    %505 = vmatpush.msra.mxu0 0.0
    %506 = vmatpush.msra.mxu0 0.0
    %507 = vmatpush.msra.mxu0 0.0
    %508 = vmatpush.msra.mxu0 0.0
    %509 = vmatpush.msra.mxu0 0.0
    %510 = vmatpush.msra.mxu0 0.0
    %511 = vmatpush.msra.mxu0 0.0
    %512 = vmatpush.msra.mxu0 0.0
    %513 = vmatpush.msra.mxu0 0.0
    %514 = vmatpush.msra.mxu0 %v306
    %515 = vmatpush.msra.mxu0 %v305
    %516 = vmatpush.msra.mxu0 %v304
    %517 = vmatpush.msra.mxu0 %v303
    %518 = vmatmul.f32.gmra.mxu0 %v500
    %v519 = vpop.f32.mrf.mxu0
    %v520 = vadd.f32 0.0, %v519
    %521 = vdwg.mxu0
    %v523 = vrot.slane %v520, 2
    %v525 = vadd.f32 %v253, %v523
    %v526 = vmul.f32 %v182, %v525
    %v527 = vtanh.pop %v526
    %v528 = vmul.f32 %v182, %v527
    %v529 = vadd.f32 %v183, %v528
    %v531 = vrot.slane %v489, 6
    %532 = vrot.lane.b32.xlu0 %v531, 32
    %v533 = vpop.permute.xlu0 %532
    %v535 = vmul.f32 %v529, %v533
    %537 = vrot.lane.b32.xlu0 %v529, 64
    %v538 = vpop.permute.xlu0 %537
    %v540 = vmul.f32 %v529, %v538
    %542 = vrot.lane.b32.xlu0 %v540, 32
    %v543 = vpop.permute.xlu0 %542
    %v545 = vadd.f32 %v535, %v543
    %v546 = vtanh.pop %v545
    %548 = vrot.lane.b32.xlu0 %v546, 64
    %v549 = vpop.permute.xlu0 %548
    %v551 = vmul.f32 %v529, %v549
    %553 = vrot.lane.b32.xlu0 %v545, 96
    %v554 = vpop.permute.xlu0 %553
    %v557 = vsel %vm299, %v554, %v531
    %559 = vrot.lane.b32.xlu0 %v551, 32
    %v560 = vpop.permute.xlu0 %559
    %v562 = vrot.slane %v496, 6
    %v564 = vsel %vm299, %v560, %v562
    %v565 = vsel %vm299, %v560, 0.0
    %v567 = vrot.slane %v564, 6
    %v568 = vsel %vm307, %v567, 0
    %570 = vmatpush.msra.mxu0 0.0
    %571 = vmatpush.msra.mxu0 0.0
    %572 = vmatpush.msra.mxu0 0.0
    %573 = vmatpush.msra.mxu0 0.0
    %574 = vmatpush.msra.mxu0 0.0
    %575 = vmatpush.msra.mxu0 0.0
    %576 = vmatpush.msra.mxu0 0.0
    %577 = vmatpush.msra.mxu0 0.0
    %578 = vmatpush.msra.mxu0 0.0
    %579 = vmatpush.msra.mxu0 0.0
    %580 = vmatpush.msra.mxu0 0.0
    %581 = vmatpush.msra.mxu0 0.0
    %582 = vmatpush.msra.mxu0 %v306
    %583 = vmatpush.msra.mxu0 %v305
    %584 = vmatpush.msra.mxu0 %v304
    %585 = vmatpush.msra.mxu0 %v303
    %586 = vmatmul.f32.gmra.mxu0 %v568
    %v587 = vpop.f32.mrf.mxu0
    %v588 = vadd.f32 0.0, %v587
    %589 = vdwg.mxu0
    %v590 = vadd.f32 %v254, %v588
    %v591 = vmul.f32 %v182, %v590
    %v592 = vtanh.pop %v591
    %v593 = vmul.f32 %v182, %v592
    %v594 = vadd.f32 %v183, %v593
    %v596 = vrot.slane %v557, 6
    %597 = vrot.lane.b32.xlu0 %v596, 32
    %v598 = vpop.permute.xlu0 %597
    %v600 = vmul.f32 %v594, %v598
    %602 = vrot.lane.b32.xlu0 %v594, 64
    %v603 = vpop.permute.xlu0 %602
    %v605 = vmul.f32 %v594, %v603
    %607 = vrot.lane.b32.xlu0 %v605, 32
    %v608 = vpop.permute.xlu0 %607
    %v610 = vadd.f32 %v600, %v608
    %v611 = vtanh.pop %v610
    %613 = vrot.lane.b32.xlu0 %v611, 64
    %v614 = vpop.permute.xlu0 %613
    %v616 = vmul.f32 %v594, %v614
    %618 = vrot.lane.b32.xlu0 %v610, 96
    %v619 = vpop.permute.xlu0 %618
    %v622 = vsel %vm300, %v619, %v596
    %624 = vrot.lane.b32.xlu0 %v616, 32
    %v625 = vpop.permute.xlu0 %624
    %v628 = vsel %vm300, %v625, %v567
    %v629 = vsel %vm300, %v625, 0.0
    %v631 = vsel %vm307, %v628, 0
    %633 = vmatpush.msra.mxu0 0.0
    %634 = vmatpush.msra.mxu0 0.0
    %635 = vmatpush.msra.mxu0 0.0
    %636 = vmatpush.msra.mxu0 0.0
    %637 = vmatpush.msra.mxu0 0.0
    %638 = vmatpush.msra.mxu0 0.0
    %639 = vmatpush.msra.mxu0 0.0
    %640 = vmatpush.msra.mxu0 0.0
    %641 = vmatpush.msra.mxu0 0.0
    %642 = vmatpush.msra.mxu0 0.0
    %643 = vmatpush.msra.mxu0 0.0
    %644 = vmatpush.msra.mxu0 0.0
    %645 = vmatpush.msra.mxu0 %v306
    %646 = vmatpush.msra.mxu0 %v305
    %647 = vmatpush.msra.mxu0 %v304
    %648 = vmatpush.msra.mxu0 %v303
    %649 = vmatmul.f32.gmra.mxu0 %v631
    %v650 = vpop.f32.mrf.mxu0
    %v651 = vadd.f32 0.0, %v650
    %652 = vdwg.mxu0
    %v654 = vrot.slane %v651, 6
    %v656 = vadd.f32 %v254, %v654
    %v657 = vmul.f32 %v182, %v656
    %v658 = vtanh.pop %v657
    %v659 = vmul.f32 %v182, %v658
    %v660 = vadd.f32 %v183, %v659
    %v662 = vrot.slane %v622, 6
    %663 = vrot.lane.b32.xlu0 %v662, 32
    %v664 = vpop.permute.xlu0 %663
    %v666 = vmul.f32 %v660, %v664
    %668 = vrot.lane.b32.xlu0 %v660, 64
    %v669 = vpop.permute.xlu0 %668
    %v671 = vmul.f32 %v660, %v669
    %673 = vrot.lane.b32.xlu0 %v671, 32
    %v674 = vpop.permute.xlu0 %673
    %v676 = vadd.f32 %v666, %v674
    %v677 = vtanh.pop %v676
    %679 = vrot.lane.b32.xlu0 %v677, 64
    %v680 = vpop.permute.xlu0 %679
    %v682 = vmul.f32 %v660, %v680
    %684 = vrot.lane.b32.xlu0 %v676, 96
    %v685 = vpop.permute.xlu0 %684
    %v688 = vsel %vm300, %v685, %v662
    %690 = vrot.lane.b32.xlu0 %v682, 32
    %v691 = vpop.permute.xlu0 %690
    %v693 = vrot.slane %v628, 6
    %v695 = vsel %vm300, %v691, %v693
    %v696 = vsel %vm300, %v691, 0.0
    %v698 = vrot.slane %v695, 2
    %v699 = vsel %vm307, %v698, 0
    %701 = vmatpush.msra.mxu0 0.0
    %702 = vmatpush.msra.mxu0 0.0
    %703 = vmatpush.msra.mxu0 0.0
    %704 = vmatpush.msra.mxu0 0.0
    %705 = vmatpush.msra.mxu0 0.0
    %706 = vmatpush.msra.mxu0 0.0
    %707 = vmatpush.msra.mxu0 0.0
    %708 = vmatpush.msra.mxu0 0.0
    %709 = vmatpush.msra.mxu0 0.0
    %710 = vmatpush.msra.mxu0 0.0
    %711 = vmatpush.msra.mxu0 0.0
    %712 = vmatpush.msra.mxu0 0.0
    %713 = vmatpush.msra.mxu0 %v306
    %714 = vmatpush.msra.mxu0 %v305
    %715 = vmatpush.msra.mxu0 %v304
    %716 = vmatpush.msra.mxu0 %v303
    %717 = vmatmul.f32.gmra.mxu0 %v699
    %v718 = vpop.f32.mrf.mxu0
    %v719 = vadd.f32 0.0, %v718
    %720 = vdwg.mxu0
    %v722 = vrot.slane %v719, 4
    %v724 = vadd.f32 %v254, %v722
    %v725 = vmul.f32 %v182, %v724
    %v726 = vtanh.pop %v725
    %v727 = vmul.f32 %v182, %v726
    %v728 = vadd.f32 %v183, %v727
    %v730 = vrot.slane %v688, 6
    %731 = vrot.lane.b32.xlu0 %v730, 32
    %v732 = vpop.permute.xlu0 %731
    %v734 = vmul.f32 %v728, %v732
    %736 = vrot.lane.b32.xlu0 %v728, 64
    %v737 = vpop.permute.xlu0 %736
    %v739 = vmul.f32 %v728, %v737
    %741 = vrot.lane.b32.xlu0 %v739, 32
    %v742 = vpop.permute.xlu0 %741
    %v744 = vadd.f32 %v734, %v742
    %v745 = vtanh.pop %v744
    %747 = vrot.lane.b32.xlu0 %v745, 64
    %v748 = vpop.permute.xlu0 %747
    %v750 = vmul.f32 %v728, %v748
    %752 = vrot.lane.b32.xlu0 %v744, 96
    %v753 = vpop.permute.xlu0 %752
    %v756 = vsel %vm300, %v753, %v730
    %758 = vrot.lane.b32.xlu0 %v750, 32
    %v759 = vpop.permute.xlu0 %758
    %v761 = vrot.slane %v695, 6
    %v763 = vsel %vm300, %v759, %v761
    %v764 = vsel %vm300, %v759, 0.0
    %v766 = vrot.slane %v763, 4
    %v767 = vsel %vm307, %v766, 0
    %769 = vmatpush.msra.mxu0 0.0
    %770 = vmatpush.msra.mxu0 0.0
    %771 = vmatpush.msra.mxu0 0.0
    %772 = vmatpush.msra.mxu0 0.0
    %773 = vmatpush.msra.mxu0 0.0
    %774 = vmatpush.msra.mxu0 0.0
    %775 = vmatpush.msra.mxu0 0.0
    %776 = vmatpush.msra.mxu0 0.0
    %777 = vmatpush.msra.mxu0 0.0
    %778 = vmatpush.msra.mxu0 0.0
    %779 = vmatpush.msra.mxu0 0.0
    %780 = vmatpush.msra.mxu0 0.0
    %781 = vmatpush.msra.mxu0 %v306
    %782 = vmatpush.msra.mxu0 %v305
    %783 = vmatpush.msra.mxu0 %v304
    %784 = vmatpush.msra.mxu0 %v303
    %785 = vmatmul.f32.gmra.mxu0 %v767
    %v786 = vpop.f32.mrf.mxu0
    %v787 = vadd.f32 0.0, %v786
    %788 = vdwg.mxu0
    %v790 = vrot.slane %v787, 2
    %v792 = vadd.f32 %v254, %v790
    %v793 = vmul.f32 %v182, %v792
    %v794 = vtanh.pop %v793
    %v795 = vmul.f32 %v182, %v794
    %v796 = vadd.f32 %v183, %v795
    %v798 = vrot.slane %v756, 6
    %799 = vrot.lane.b32.xlu0 %v798, 32
    %v800 = vpop.permute.xlu0 %799
    %v802 = vmul.f32 %v796, %v800
    %804 = vrot.lane.b32.xlu0 %v796, 64
    %v805 = vpop.permute.xlu0 %804
    %v807 = vmul.f32 %v796, %v805
    %809 = vrot.lane.b32.xlu0 %v807, 32
    %v810 = vpop.permute.xlu0 %809
    %v812 = vadd.f32 %v802, %v810
    %v813 = vtanh.pop %v812
    %815 = vrot.lane.b32.xlu0 %v813, 64
    %v816 = vpop.permute.xlu0 %815
    %v818 = vmul.f32 %v796, %v816
    %820 = vrot.lane.b32.xlu0 %v812, 96
    %v821 = vpop.permute.xlu0 %820
    %v824 = vsel %vm300, %v821, %v798
    %826 = vrot.lane.b32.xlu0 %v818, 32
    %v827 = vpop.permute.xlu0 %826
    %v829 = vrot.slane %v763, 6
    %v831 = vsel %vm300, %v827, %v829
    %v832 = vsel %vm300, %v827, 0.0
    %v834 = vrot.slane %v831, 6
    %v835 = vsel %vm307, %v834, 0
    %837 = vmatpush.msra.mxu0 0.0
    %838 = vmatpush.msra.mxu0 0.0
    %839 = vmatpush.msra.mxu0 0.0
    %840 = vmatpush.msra.mxu0 0.0
    %841 = vmatpush.msra.mxu0 0.0
    %842 = vmatpush.msra.mxu0 0.0
    %843 = vmatpush.msra.mxu0 0.0
    %844 = vmatpush.msra.mxu0 0.0
    %845 = vmatpush.msra.mxu0 0.0
    %846 = vmatpush.msra.mxu0 0.0
    %847 = vmatpush.msra.mxu0 0.0
    %848 = vmatpush.msra.mxu0 0.0
    %849 = vmatpush.msra.mxu0 %v306
    %850 = vmatpush.msra.mxu0 %v305
    %851 = vmatpush.msra.mxu0 %v304
    %852 = vmatpush.msra.mxu0 %v303
    %853 = vmatmul.f32.gmra.mxu0 %v835
    %v854 = vpop.f32.mrf.mxu0
    %v855 = vadd.f32 0.0, %v854
    %856 = vdwg.mxu0
    %v857 = vadd.f32 %v255, %v855
    %v858 = vmul.f32 %v182, %v857
    %v859 = vtanh.pop %v858
    %v860 = vmul.f32 %v182, %v859
    %v861 = vadd.f32 %v183, %v860
    %v863 = vrot.slane %v824, 6
    %864 = vrot.lane.b32.xlu0 %v863, 32
    %v865 = vpop.permute.xlu0 %864
    %v867 = vmul.f32 %v861, %v865
    %869 = vrot.lane.b32.xlu0 %v861, 64
    %v870 = vpop.permute.xlu0 %869
    %v872 = vmul.f32 %v861, %v870
    %874 = vrot.lane.b32.xlu0 %v872, 32
    %v875 = vpop.permute.xlu0 %874
    %v877 = vadd.f32 %v867, %v875
    %v878 = vtanh.pop %v877
    %880 = vrot.lane.b32.xlu0 %v878, 64
    %v881 = vpop.permute.xlu0 %880
    %v883 = vmul.f32 %v861, %v881
    %885 = vrot.lane.b32.xlu0 %v877, 96
    %v886 = vpop.permute.xlu0 %885
    %v889 = vsel %vm301, %v886, %v863
    %891 = vrot.lane.b32.xlu0 %v883, 32
    %v892 = vpop.permute.xlu0 %891
    %v895 = vsel %vm301, %v892, %v834
    %v896 = vsel %vm301, %v892, 0.0
    %v898 = vsel %vm307, %v895, 0
    %900 = vmatpush.msra.mxu0 0.0
    %901 = vmatpush.msra.mxu0 0.0
    %902 = vmatpush.msra.mxu0 0.0
    %903 = vmatpush.msra.mxu0 0.0
    %904 = vmatpush.msra.mxu0 0.0
    %905 = vmatpush.msra.mxu0 0.0
    %906 = vmatpush.msra.mxu0 0.0
    %907 = vmatpush.msra.mxu0 0.0
    %908 = vmatpush.msra.mxu0 0.0
    %909 = vmatpush.msra.mxu0 0.0
    %910 = vmatpush.msra.mxu0 0.0
    %911 = vmatpush.msra.mxu0 0.0
    %912 = vmatpush.msra.mxu0 %v306
    %913 = vmatpush.msra.mxu0 %v305
    %914 = vmatpush.msra.mxu0 %v304
    %915 = vmatpush.msra.mxu0 %v303
    %916 = vmatmul.f32.gmra.mxu0 %v898
    %v917 = vpop.f32.mrf.mxu0
    %v918 = vadd.f32 0.0, %v917
    %919 = vdwg.mxu0
    %v921 = vrot.slane %v918, 6
    %v923 = vadd.f32 %v255, %v921
    %v924 = vmul.f32 %v182, %v923
    %v925 = vtanh.pop %v924
    %v926 = vmul.f32 %v182, %v925
    %v927 = vadd.f32 %v183, %v926
    %v929 = vrot.slane %v889, 6
    %930 = vrot.lane.b32.xlu0 %v929, 32
    %v931 = vpop.permute.xlu0 %930
    %v933 = vmul.f32 %v927, %v931
    %935 = vrot.lane.b32.xlu0 %v927, 64
    %v936 = vpop.permute.xlu0 %935
    %v938 = vmul.f32 %v927, %v936
    %940 = vrot.lane.b32.xlu0 %v938, 32
    %v941 = vpop.permute.xlu0 %940
    %v943 = vadd.f32 %v933, %v941
    %v944 = vtanh.pop %v943
    %946 = vrot.lane.b32.xlu0 %v944, 64
    %v947 = vpop.permute.xlu0 %946
    %v949 = vmul.f32 %v927, %v947
    %951 = vrot.lane.b32.xlu0 %v943, 96
    %v952 = vpop.permute.xlu0 %951
    %v955 = vsel %vm301, %v952, %v929
    %957 = vrot.lane.b32.xlu0 %v949, 32
    %v958 = vpop.permute.xlu0 %957
    %v960 = vrot.slane %v895, 6
    %v962 = vsel %vm301, %v958, %v960
    %v963 = vsel %vm301, %v958, 0.0
    %v965 = vrot.slane %v962, 2
    %v966 = vsel %vm307, %v965, 0
    %968 = vmatpush.msra.mxu0 0.0
    %969 = vmatpush.msra.mxu0 0.0
    %970 = vmatpush.msra.mxu0 0.0
    %971 = vmatpush.msra.mxu0 0.0
    %972 = vmatpush.msra.mxu0 0.0
    %973 = vmatpush.msra.mxu0 0.0
    %974 = vmatpush.msra.mxu0 0.0
    %975 = vmatpush.msra.mxu0 0.0
    %976 = vmatpush.msra.mxu0 0.0
    %977 = vmatpush.msra.mxu0 0.0
    %978 = vmatpush.msra.mxu0 0.0
    %979 = vmatpush.msra.mxu0 0.0
    %980 = vmatpush.msra.mxu0 %v306
    %981 = vmatpush.msra.mxu0 %v305
    %982 = vmatpush.msra.mxu0 %v304
    %983 = vmatpush.msra.mxu0 %v303
    %984 = vmatmul.f32.gmra.mxu0 %v966
    %v985 = vpop.f32.mrf.mxu0
    %v986 = vadd.f32 0.0, %v985
    %987 = vdwg.mxu0
    %v989 = vrot.slane %v986, 4
    %v991 = vadd.f32 %v255, %v989
    %v992 = vmul.f32 %v182, %v991
    %v993 = vtanh.pop %v992
    %v994 = vmul.f32 %v182, %v993
    %v995 = vadd.f32 %v183, %v994
    %v997 = vrot.slane %v955, 6
    %998 = vrot.lane.b32.xlu0 %v997, 32
    %v999 = vpop.permute.xlu0 %998
    %v1001 = vmul.f32 %v995, %v999
    %1003 = vrot.lane.b32.xlu0 %v995, 64
    %v1004 = vpop.permute.xlu0 %1003
    %v1006 = vmul.f32 %v995, %v1004
    %1008 = vrot.lane.b32.xlu0 %v1006, 32
    %v1009 = vpop.permute.xlu0 %1008
    %v1011 = vadd.f32 %v1001, %v1009
    %v1012 = vtanh.pop %v1011
    %1014 = vrot.lane.b32.xlu0 %v1012, 64
    %v1015 = vpop.permute.xlu0 %1014
    %v1017 = vmul.f32 %v995, %v1015
    %1019 = vrot.lane.b32.xlu0 %v1011, 96
    %v1020 = vpop.permute.xlu0 %1019
    %v1023 = vsel %vm301, %v1020, %v997
    %1025 = vrot.lane.b32.xlu0 %v1017, 32
    %v1026 = vpop.permute.xlu0 %1025
    %v1028 = vrot.slane %v962, 6
    %v1030 = vsel %vm301, %v1026, %v1028
    %v1031 = vsel %vm301, %v1026, 0.0
    %v1033 = vrot.slane %v1030, 4
    %v1034 = vsel %vm307, %v1033, 0
    %1036 = vmatpush.msra.mxu0 0.0
    %1037 = vmatpush.msra.mxu0 0.0
    %1038 = vmatpush.msra.mxu0 0.0
    %1039 = vmatpush.msra.mxu0 0.0
    %1040 = vmatpush.msra.mxu0 0.0
    %1041 = vmatpush.msra.mxu0 0.0
    %1042 = vmatpush.msra.mxu0 0.0
    %1043 = vmatpush.msra.mxu0 0.0
    %1044 = vmatpush.msra.mxu0 0.0
    %1045 = vmatpush.msra.mxu0 0.0
    %1046 = vmatpush.msra.mxu0 0.0
    %1047 = vmatpush.msra.mxu0 0.0
    %1048 = vmatpush.msra.mxu0 %v306
    %1049 = vmatpush.msra.mxu0 %v305
    %1050 = vmatpush.msra.mxu0 %v304
    %1051 = vmatpush.msra.mxu0 %v303
    %1052 = vmatmul.f32.gmra.mxu0 %v1034
    %v1053 = vpop.f32.mrf.mxu0
    %v1054 = vadd.f32 0.0, %v1053
    %1055 = vdwg.mxu0
    %v1057 = vrot.slane %v1054, 2
    %v1059 = vadd.f32 %v255, %v1057
    %v1060 = vmul.f32 %v182, %v1059
    %v1061 = vtanh.pop %v1060
    %v1062 = vmul.f32 %v182, %v1061
    %v1063 = vadd.f32 %v183, %v1062
    %v1065 = vrot.slane %v1023, 6
    %1066 = vrot.lane.b32.xlu0 %v1065, 32
    %v1067 = vpop.permute.xlu0 %1066
    %v1069 = vmul.f32 %v1063, %v1067
    %1071 = vrot.lane.b32.xlu0 %v1063, 64
    %v1072 = vpop.permute.xlu0 %1071
    %v1074 = vmul.f32 %v1063, %v1072
    %1076 = vrot.lane.b32.xlu0 %v1074, 32
    %v1077 = vpop.permute.xlu0 %1076
    %v1079 = vadd.f32 %v1069, %v1077
    %v1080 = vtanh.pop %v1079
    %1082 = vrot.lane.b32.xlu0 %v1080, 64
    %v1083 = vpop.permute.xlu0 %1082
    %v1085 = vmul.f32 %v1063, %v1083
    %1087 = vrot.lane.b32.xlu0 %v1079, 96
    %v1088 = vpop.permute.xlu0 %1087
    %v1091 = vsel %vm301, %v1088, %v1065
    %1093 = vrot.lane.b32.xlu0 %v1085, 32
    %v1094 = vpop.permute.xlu0 %1093
    %v1096 = vrot.slane %v1030, 6
    %v1098 = vsel %vm301, %v1094, %v1096
    %v1099 = vsel %vm301, %v1094, 0.0
    %v1101 = vrot.slane %v1098, 6
    %v1102 = vsel %vm307, %v1101, 0
    %1104 = vmatpush.msra.mxu0 0.0
    %1105 = vmatpush.msra.mxu0 0.0
    %1106 = vmatpush.msra.mxu0 0.0
    %1107 = vmatpush.msra.mxu0 0.0
    %1108 = vmatpush.msra.mxu0 0.0
    %1109 = vmatpush.msra.mxu0 0.0
    %1110 = vmatpush.msra.mxu0 0.0
    %1111 = vmatpush.msra.mxu0 0.0
    %1112 = vmatpush.msra.mxu0 0.0
    %1113 = vmatpush.msra.mxu0 0.0
    %1114 = vmatpush.msra.mxu0 0.0
    %1115 = vmatpush.msra.mxu0 0.0
    %1116 = vmatpush.msra.mxu0 %v306
    %1117 = vmatpush.msra.mxu0 %v305
    %1118 = vmatpush.msra.mxu0 %v304
    %1119 = vmatpush.msra.mxu0 %v303
    %1120 = vmatmul.f32.gmra.mxu0 %v1102
    %v1121 = vpop.f32.mrf.mxu0
    %v1122 = vadd.f32 0.0, %v1121
    %1123 = vdwg.mxu0
    %v1124 = vadd.f32 %v256, %v1122
    %v1125 = vmul.f32 %v182, %v1124
    %v1126 = vtanh.pop %v1125
    %v1127 = vmul.f32 %v182, %v1126
    %v1128 = vadd.f32 %v183, %v1127
    %v1130 = vrot.slane %v1091, 6
    %1131 = vrot.lane.b32.xlu0 %v1130, 32
    %v1132 = vpop.permute.xlu0 %1131
    %v1134 = vmul.f32 %v1128, %v1132
    %1136 = vrot.lane.b32.xlu0 %v1128, 64
    %v1137 = vpop.permute.xlu0 %1136
    %v1139 = vmul.f32 %v1128, %v1137
    %1141 = vrot.lane.b32.xlu0 %v1139, 32
    %v1142 = vpop.permute.xlu0 %1141
    %v1144 = vadd.f32 %v1134, %v1142
    %v1145 = vtanh.pop %v1144
    %1147 = vrot.lane.b32.xlu0 %v1145, 64
    %v1148 = vpop.permute.xlu0 %1147
    %v1150 = vmul.f32 %v1128, %v1148
    %1152 = vrot.lane.b32.xlu0 %v1144, 96
    %v1153 = vpop.permute.xlu0 %1152
    %v1156 = vsel %vm302, %v1153, %v1130
    %1158 = vrot.lane.b32.xlu0 %v1150, 32
    %v1159 = vpop.permute.xlu0 %1158
    %v1162 = vsel %vm302, %v1159, %v1101
    %v1163 = vsel %vm302, %v1159, 0.0
    %v1165 = vsel %vm307, %v1162, 0
    %1167 = vmatpush.msra.mxu0 0.0
    %1168 = vmatpush.msra.mxu0 0.0
    %1169 = vmatpush.msra.mxu0 0.0
    %1170 = vmatpush.msra.mxu0 0.0
    %1171 = vmatpush.msra.mxu0 0.0
    %1172 = vmatpush.msra.mxu0 0.0
    %1173 = vmatpush.msra.mxu0 0.0
    %1174 = vmatpush.msra.mxu0 0.0
    %1175 = vmatpush.msra.mxu0 0.0
    %1176 = vmatpush.msra.mxu0 0.0
    %1177 = vmatpush.msra.mxu0 0.0
    %1178 = vmatpush.msra.mxu0 0.0
    %1179 = vmatpush.msra.mxu0 %v306
    %1180 = vmatpush.msra.mxu0 %v305
    %1181 = vmatpush.msra.mxu0 %v304
    %1182 = vmatpush.msra.mxu0 %v303
    %1183 = vmatmul.f32.gmra.mxu0 %v1165
    %v1184 = vpop.f32.mrf.mxu0
    %v1185 = vadd.f32 0.0, %v1184
    %1186 = vdwg.mxu0
    %v1188 = vrot.slane %v1185, 6
    %v1190 = vadd.f32 %v256, %v1188
    %v1191 = vmul.f32 %v182, %v1190
    %v1192 = vtanh.pop %v1191
    %v1193 = vmul.f32 %v182, %v1192
    %v1194 = vadd.f32 %v183, %v1193
    %v1196 = vrot.slane %v1156, 6
    %1197 = vrot.lane.b32.xlu0 %v1196, 32
    %v1198 = vpop.permute.xlu0 %1197
    %v1200 = vmul.f32 %v1194, %v1198
    %1202 = vrot.lane.b32.xlu0 %v1194, 64
    %v1203 = vpop.permute.xlu0 %1202
    %v1205 = vmul.f32 %v1194, %v1203
    %1207 = vrot.lane.b32.xlu0 %v1205, 32
    %v1208 = vpop.permute.xlu0 %1207
    %v1210 = vadd.f32 %v1200, %v1208
    %v1211 = vtanh.pop %v1210
    %1213 = vrot.lane.b32.xlu0 %v1211, 64
    %v1214 = vpop.permute.xlu0 %1213
    %v1216 = vmul.f32 %v1194, %v1214
    %1218 = vrot.lane.b32.xlu0 %v1210, 96
    %v1219 = vpop.permute.xlu0 %1218
    %v1222 = vsel %vm302, %v1219, %v1196
    %1224 = vrot.lane.b32.xlu0 %v1216, 32
    %v1225 = vpop.permute.xlu0 %1224
    %v1227 = vrot.slane %v1162, 6
    %v1229 = vsel %vm302, %v1225, %v1227
    %v1230 = vsel %vm302, %v1225, 0.0
    %v1232 = vrot.slane %v1229, 2
    %v1233 = vsel %vm307, %v1232, 0
    %1235 = vmatpush.msra.mxu0 0.0
    %1236 = vmatpush.msra.mxu0 0.0
    %1237 = vmatpush.msra.mxu0 0.0
    %1238 = vmatpush.msra.mxu0 0.0
    %1239 = vmatpush.msra.mxu0 0.0
    %1240 = vmatpush.msra.mxu0 0.0
    %1241 = vmatpush.msra.mxu0 0.0
    %1242 = vmatpush.msra.mxu0 0.0
    %1243 = vmatpush.msra.mxu0 0.0
    %1244 = vmatpush.msra.mxu0 0.0
    %1245 = vmatpush.msra.mxu0 0.0
    %1246 = vmatpush.msra.mxu0 0.0
    %1247 = vmatpush.msra.mxu0 %v306
    %1248 = vmatpush.msra.mxu0 %v305
    %1249 = vmatpush.msra.mxu0 %v304
    %1250 = vmatpush.msra.mxu0 %v303
    %1251 = vmatmul.f32.gmra.mxu0 %v1233
    %v1252 = vpop.f32.mrf.mxu0
    %v1253 = vadd.f32 0.0, %v1252
    %1254 = vdwg.mxu0
    %v1256 = vrot.slane %v1253, 4
    %v1258 = vadd.f32 %v256, %v1256
    %v1259 = vmul.f32 %v182, %v1258
    %v1260 = vtanh.pop %v1259
    %v1261 = vmul.f32 %v182, %v1260
    %v1262 = vadd.f32 %v183, %v1261
    %v1264 = vrot.slane %v1222, 6
    %1265 = vrot.lane.b32.xlu0 %v1264, 32
    %v1266 = vpop.permute.xlu0 %1265
    %v1268 = vmul.f32 %v1262, %v1266
    %1270 = vrot.lane.b32.xlu0 %v1262, 64
    %v1271 = vpop.permute.xlu0 %1270
    %v1273 = vmul.f32 %v1262, %v1271
    %1275 = vrot.lane.b32.xlu0 %v1273, 32
    %v1276 = vpop.permute.xlu0 %1275
    %v1278 = vadd.f32 %v1268, %v1276
    %v1279 = vtanh.pop %v1278
    %1281 = vrot.lane.b32.xlu0 %v1279, 64
    %v1282 = vpop.permute.xlu0 %1281
    %v1284 = vmul.f32 %v1262, %v1282
    %1286 = vrot.lane.b32.xlu0 %v1278, 96
    %v1287 = vpop.permute.xlu0 %1286
    %v1290 = vsel %vm302, %v1287, %v1264
    %1292 = vrot.lane.b32.xlu0 %v1284, 32
    %v1293 = vpop.permute.xlu0 %1292
    %v1295 = vrot.slane %v1229, 6
    %v1297 = vsel %vm302, %v1293, %v1295
    %v1298 = vsel %vm302, %v1293, 0.0
    %v1300 = vrot.slane %v1297, 4
    %v1301 = vsel %vm307, %v1300, 0
    %1303 = vmatpush.msra.mxu0 0.0
    %1304 = vmatpush.msra.mxu0 0.0
    %1305 = vmatpush.msra.mxu0 0.0
    %1306 = vmatpush.msra.mxu0 0.0
    %1307 = vmatpush.msra.mxu0 0.0
    %1308 = vmatpush.msra.mxu0 0.0
    %1309 = vmatpush.msra.mxu0 0.0
    %1310 = vmatpush.msra.mxu0 0.0
    %1311 = vmatpush.msra.mxu0 0.0
    %1312 = vmatpush.msra.mxu0 0.0
    %1313 = vmatpush.msra.mxu0 0.0
    %1314 = vmatpush.msra.mxu0 0.0
    %1315 = vmatpush.msra.mxu0 %v306
    %1316 = vmatpush.msra.mxu0 %v305
    %1317 = vmatpush.msra.mxu0 %v304
    %1318 = vmatpush.msra.mxu0 %v303
    %1319 = vmatmul.f32.gmra.mxu0 %v1301
    %v1320 = vpop.f32.mrf.mxu0
    %v1321 = vadd.f32 0.0, %v1320
    %1322 = vdwg.mxu0
    %v1324 = vrot.slane %v1321, 2
    %v1326 = vadd.f32 %v256, %v1324
    %v1327 = vmul.f32 %v182, %v1326
    %v1328 = vtanh.pop %v1327
    %v1329 = vmul.f32 %v182, %v1328
    %v1330 = vadd.f32 %v183, %v1329
    %v1332 = vrot.slane %v1290, 6
    %1333 = vrot.lane.b32.xlu0 %v1332, 32
    %v1334 = vpop.permute.xlu0 %1333
    %v1336 = vmul.f32 %v1330, %v1334
    %1338 = vrot.lane.b32.xlu0 %v1330, 64
    %v1339 = vpop.permute.xlu0 %1338
    %v1341 = vmul.f32 %v1330, %v1339
    %1343 = vrot.lane.b32.xlu0 %v1341, 32
    %v1344 = vpop.permute.xlu0 %1343
    %v1346 = vadd.f32 %v1336, %v1344
    %v1347 = vtanh.pop %v1346
    %1349 = vrot.lane.b32.xlu0 %v1347, 64
    %v1350 = vpop.permute.xlu0 %1349
    %v1352 = vmul.f32 %v1330, %v1350
    %1354 = vrot.lane.b32.xlu0 %v1352, 32
    %v1355 = vpop.permute.xlu0 %1354
    %v1357 = vsel %vm302, %v1355, 0.0
    %v1358 = vsel %vm204, %v362, %v429
    %v1359 = vsel %vm206, %v1358, %v497
    %v1360 = vsel %vm208, %v1359, %v565
    %v1361 = vsel %vm204, %v629, %v696
    %v1362 = vsel %vm206, %v1361, %v764
    %v1363 = vsel %vm208, %v1362, %v832
    %v1364 = vsel %vm204, %v896, %v963
    %v1365 = vsel %vm206, %v1364, %v1031
    %v1366 = vsel %vm208, %v1365, %v1099
    %v1367 = vsel %vm204, %v1163, %v1230
    %v1368 = vsel %vm206, %v1367, %v1298
    %v1369 = vsel %vm208, %v1368, %v1357
    %v1371 = vrot.slane %v1357, 6
    %v1374 = vrot.slane %v1298, 2
    %v1377 = vrot.slane %v1230, 6
    %v1380 = vrot.slane %v1163, 2
    %v1383 = vrot.slane %v1099, 6
    %v1386 = vrot.slane %v1031, 2
    %v1389 = vrot.slane %v963, 6
    %v1392 = vrot.slane %v896, 2
    %v1395 = vrot.slane %v832, 6
    %v1398 = vrot.slane %v764, 2
    %v1401 = vrot.slane %v696, 6
    %v1404 = vrot.slane %v629, 2
    %v1407 = vrot.slane %v565, 6
    %v1410 = vrot.slane %v497, 2
    %v1413 = vrot.slane %v429, 6
    %v1415 = vrot.slane %v362, 2
    %v1417 = vsel %vm204, %v1371, %v1374
    %v1418 = vsel %vm206, %v1417, %v1377
    %v1419 = vsel %vm208, %v1418, %v1380
    %v1420 = vsel %vm204, %v1383, %v1386
    %v1421 = vsel %vm206, %v1420, %v1389
    %v1422 = vsel %vm208, %v1421, %v1392
    %v1423 = vsel %vm204, %v1395, %v1398
    %v1424 = vsel %vm206, %v1423, %v1401
    %v1425 = vsel %vm208, %v1424, %v1404
    %v1426 = vsel %vm204, %v1407, %v1410
    %v1427 = vsel %vm206, %v1426, %v1413
    %v1428 = vsel %vm208, %v1427, %v1415
    %v1429 = vsel %vm111, %v1360, %v1419
    %v1430 = vsel %vm111, %v1363, %v1422
    %v1431 = vsel %vm111, %v1366, %v1425
    %v1432 = vsel %vm111, %v1369, %v1428
    %v1433 = vld [vmem:[%s5] sm:$0xff]
    %v1434 = vld [vmem:[%s5 + $0x8] sm:$0xff]
    %v1435 = vld [vmem:[%s5 + $0x10] sm:$0xff]
    %v1436 = vld [vmem:[%s5 + $0x18] sm:$0xff]
    %v1438 = vsel %vm307, %v1429, 0
    %v1441 = vsel %vm307, %v1430, 0
    %v1444 = vsel %vm307, %v1431, 0
    %v1447 = vsel %vm307, %v1432, 0
    %1449 = vmatpush.msra.mxu0 0.0
    %1450 = vmatpush.msra.mxu0 0.0
    %1451 = vmatpush.msra.mxu0 0.0
    %1452 = vmatpush.msra.mxu0 0.0
    %1453 = vmatpush.msra.mxu0 0.0
    %1454 = vmatpush.msra.mxu0 0.0
    %1455 = vmatpush.msra.mxu0 0.0
    %1456 = vmatpush.msra.mxu0 0.0
    %1457 = vmatpush.msra.mxu0 0.0
    %1458 = vmatpush.msra.mxu0 0.0
    %1459 = vmatpush.msra.mxu0 0.0
    %1460 = vmatpush.msra.mxu0 0.0
    %1461 = vmatpush.msra.mxu0 %v1436
    %1462 = vmatpush.msra.mxu0 %v1435
    %1463 = vmatpush.msra.mxu0 %v1434
    %1464 = vmatpush.msra.mxu0 %v1433
    %1465 = vmatmul.f32.gmra.mxu0 %v1438
    %v1466 = vpop.f32.mrf.mxu0
    %v1467 = vadd.f32 0.0, %v1466
    %1468 = vmatmul.f32.gmra.mxu0 %v1441
    %v1469 = vpop.f32.mrf.mxu0
    %v1470 = vadd.f32 0.0, %v1469
    %1471 = vmatmul.f32.gmra.mxu0 %v1444
    %v1472 = vpop.f32.mrf.mxu0
    %v1473 = vadd.f32 0.0, %v1472
    %1474 = vmatmul.f32.gmra.mxu0 %v1447
    %v1475 = vpop.f32.mrf.mxu0
    %v1476 = vadd.f32 0.0, %v1475
    %1477 = vdwg.mxu0
    %vm1478 = vcmp.gt.f32.partialorder %v161, 0.0
    %vm1479 = vcmp.gt.f32.partialorder %v162, 0.0
    %vm1480 = vcmp.gt.f32.partialorder %v163, 0.0
    %vm1481 = vcmp.gt.f32.partialorder %v164, 0.0
    %v1482 = vsel %vm1478, 1, 0
    %v1483 = vsel %vm1479, 1, 0
    %v1484 = vsel %vm1480, 1, 0
    %v1485 = vsel %vm1481, 1, 0
    %1486 = vset.pattern.permute.xlu0 0
    %1487 = vperm.xlu0 %1486, %v1482
    %v1488 = vpop.permute.xlu0 %1487
    %1489 = vset.pattern.permute.xlu0 0
    %1490 = vperm.xlu0 %1489, %v1483
    %v1491 = vpop.permute.xlu0 %1490
    %1492 = vset.pattern.permute.xlu0 0
    %1493 = vperm.xlu0 %1492, %v1484
    %v1494 = vpop.permute.xlu0 %1493
    %1495 = vset.pattern.permute.xlu0 0
    %1496 = vperm.xlu0 %1495, %v1485
    %v1497 = vpop.permute.xlu0 %1496
    %vm1498 = vcmp.eq.s32.totalorder %v1488, 1
    %vm1499 = vcmp.eq.s32.totalorder %v1491, 1
    %vm1500 = vcmp.eq.s32.totalorder %v1494, 1
    %vm1501 = vcmp.eq.s32.totalorder %v1497, 1
    %v1502 = vsel %vm1498, %v1467, -1e+30
    %v1503 = vsel %vm1499, %v1470, -1e+30
    %v1504 = vsel %vm1500, %v1473, -1e+30
    %v1505 = vsel %vm1501, %v1476, -1e+30
    %vm1506 = vcmask 31744
    %v1507 = vsel %vm1506, %v1502, -inf
    %v1508 = vsel %vm1506, %v1503, -inf
    %v1509 = vsel %vm1506, %v1504, -inf
    %v1510 = vsel %vm1506, %v1505, -inf
    %v1511 = vmax.f32 %v1507, %v1508
    %v1512 = vmax.f32 %v1509, %v1510
    %v1513 = vmax.f32 %v1511, %v1512
    %v1514 = vrot.slane %v1513, 4
    %v1515 = vmax.f32 %v1513, %v1514
    %v1516 = vrot.slane %v1515, 2
    %v1517 = vmax.f32 %v1515, %v1516
    %v1518 = vrot.slane %v1517, 1
    %v1519 = vmax.f32 %v1517, %v1518
    %v1520 = vsub.f32 %v1502, %v1519
    %v1521 = vsub.f32 %v1503, %v1519
    %v1522 = vsub.f32 %v1504, %v1519
    %v1523 = vsub.f32 %v1505, %v1519
    %v1524 = vmul.f32 %v1520, 1.442695
    %v1525 = vpow.pop %v1524
    %v1526 = vmul.f32 %v1521, 1.442695
    %v1527 = vpow.pop %v1526
    %v1528 = vmul.f32 %v1522, 1.442695
    %v1529 = vpow.pop %v1528
    %v1530 = vmul.f32 %v1523, 1.442695
    %v1531 = vpow.pop %v1530
    %v1532 = vlaneseq
    %v1533 = vshrl.u32 %v1532, 7
    %v1534 = vadd.s32 %v1533, 8
    %v1535 = vadd.s32 %v1533, 16
    %v1536 = vadd.s32 %v1533, 24
    %vm1537 = vcmp.lt.s32.totalorder %v1533, 0
    %v1538 = vsub.s32 0, %v1533
    %v1539 = vsel %vm1537, %v1538, %v1533
    %v1540 = vshrl.u32 %v1539, 1
    %v1541 = vand.u32 %v1539, 1
    %v1542 = vsub.s32 0, %v1541
    %v1543 = vsel %vm1537, %v1542, %v1541
    %vm1544 = vcmp.lt.s32.totalorder %v1534, 0
    %v1545 = vsub.s32 0, %v1534
    %v1546 = vsel %vm1544, %v1545, %v1534
    %v1547 = vshrl.u32 %v1546, 1
    %v1548 = vand.u32 %v1546, 1
    %v1549 = vsub.s32 0, %v1548
    %v1550 = vsel %vm1544, %v1549, %v1548
    %vm1551 = vcmp.lt.s32.totalorder %v1535, 0
    %v1552 = vsub.s32 0, %v1535
    %v1553 = vsel %vm1551, %v1552, %v1535
    %v1554 = vshrl.u32 %v1553, 1
    %v1555 = vand.u32 %v1553, 1
    %v1556 = vsub.s32 0, %v1555
    %v1557 = vsel %vm1551, %v1556, %v1555
    %vm1558 = vcmp.lt.s32.totalorder %v1536, 0
    %v1559 = vsub.s32 0, %v1536
    %v1560 = vsel %vm1558, %v1559, %v1536
    %v1561 = vshrl.u32 %v1560, 1
    %v1562 = vand.u32 %v1560, 1
    %v1563 = vsub.s32 0, %v1562
    %v1564 = vsel %vm1558, %v1563, %v1562
    %vm1565 = vcmp.ne.s32.totalorder %v1543, 0
    %vm1566 = vcmp.ne.s32.totalorder %v1550, 0
    %vm1567 = vcmp.ne.s32.totalorder %v1557, 0
    %vm1568 = vcmp.ne.s32.totalorder %v1564, 0
    %vm1569 = vcmp.lt.s32.totalorder %v1543, 0
    %vm1570 = vcmp.lt.s32.totalorder %v1550, 0
    %vm1571 = vcmp.lt.s32.totalorder %v1557, 0
    %vm1572 = vcmp.lt.s32.totalorder %v1564, 0
    %vm1573 = vmand %vm1569, %vm1565
    %vm1574 = vmand %vm1570, %vm1566
    %vm1575 = vmand %vm1571, %vm1567
    %vm1576 = vmand %vm1572, %vm1568
    %v1577 = vadd.s32 %v1543, 2
    %v1578 = vadd.s32 %v1550, 2
    %v1579 = vadd.s32 %v1557, 2
    %v1580 = vadd.s32 %v1564, 2
    %v1581 = vsel %vm1573, %v1577, %v1543
    %v1582 = vsel %vm1574, %v1578, %v1550
    %v1583 = vsel %vm1575, %v1579, %v1557
    %v1584 = vsel %vm1576, %v1580, %v1564
    %vm1585 = vcmp.lt.s32.totalorder %v35, 0
    %v1586 = vsub.s32 0, %v35
    %v1587 = vsel %vm1585, %v1586, %v35
    %v1588 = vshrl.u32 %v1587, 1
    %v1589 = vand.u32 %v1587, 1
    %v1590 = vsub.s32 0, %v1589
    %v1591 = vsel %vm1585, %v1590, %v1589
    %vm1592 = vcmp.ne.s32.totalorder %v1591, 0
    %vm1593 = vcmp.lt.s32.totalorder %v1591, 0
    %vm1594 = vmand %vm1593, %vm1592
    %v1595 = vadd.s32 %v1591, 2
    %v1596 = vsel %vm1594, %v1595, %v1591
    %vm1597 = vcmp.eq.s32.totalorder %v1581, %v1596
    %vm1598 = vcmp.eq.s32.totalorder %v1582, %v1596
    %vm1599 = vcmp.eq.s32.totalorder %v1583, %v1596
    %vm1600 = vcmp.eq.s32.totalorder %v1584, %v1596
    %v1601 = vsel %vm1597, 1, 0
    %v1602 = vsel %vm1598, 1, 0
    %v1603 = vsel %vm1599, 1, 0
    %v1604 = vsel %vm1600, 1, 0
    %v1605 = vcvt.s32.f32 %v1601
    %v1606 = vcvt.s32.f32 %v1602
    %v1607 = vcvt.s32.f32 %v1603
    %v1608 = vcvt.s32.f32 %v1604
    %v1610 = vsel %vm307, %v1605, 0
    %v1613 = vsel %vm307, %v1606, 0
    %v1616 = vsel %vm307, %v1607, 0
    %v1619 = vsel %vm307, %v1608, 0
    %1621 = vmatpush.msra.mxu0 0.0
    %1622 = vmatpush.msra.mxu0 0.0
    %1623 = vmatpush.msra.mxu0 0.0
    %1624 = vmatpush.msra.mxu0 0.0
    %1625 = vmatpush.msra.mxu0 0.0
    %1626 = vmatpush.msra.mxu0 0.0
    %1627 = vmatpush.msra.mxu0 0.0
    %1628 = vmatpush.msra.mxu0 0.0
    %1629 = vmatpush.msra.mxu0 0.0
    %1630 = vmatpush.msra.mxu0 0.0
    %1631 = vmatpush.msra.mxu0 0.0
    %1632 = vmatpush.msra.mxu0 0.0
    %1633 = vmatpush.msra.mxu0 %v1531
    %1634 = vmatpush.msra.mxu0 %v1529
    %1635 = vmatpush.msra.mxu0 %v1527
    %1636 = vmatpush.msra.mxu0 %v1525
    %1637 = vmatmul.f32.gmra.mxu0 %v1610
    %v1638 = vpop.f32.mrf.mxu0
    %v1639 = vadd.f32 0.0, %v1638
    %1640 = vmatmul.f32.gmra.mxu0 %v1613
    %v1641 = vpop.f32.mrf.mxu0
    %v1642 = vadd.f32 0.0, %v1641
    %1643 = vmatmul.f32.gmra.mxu0 %v1616
    %v1644 = vpop.f32.mrf.mxu0
    %v1645 = vadd.f32 0.0, %v1644
    %1646 = vmatmul.f32.gmra.mxu0 %v1619
    %v1647 = vpop.f32.mrf.mxu0
    %v1648 = vadd.f32 0.0, %v1647
    %1649 = vdwg.mxu0
    %v1650 = vrcp.pop %v1639
    %v1651 = vmul.f32 %v1639, %v1650
    %v1652 = vsub.f32 1.0, %v1651
    %v1653 = vmul.f32 %v1650, %v1652
    %v1654 = vadd.f32 %v1650, %v1653
    %vm1655 = vweird.f32 %v1639
    %vm1656 = vweird.f32 %v1650
    %vm1657 = vmor %vm1655, %vm1656
    %v1658 = vsel %vm1657, %v1650, %v1654
    %v1659 = vand.u32 2147483647, %v1639
    %vm1660 = vcmp.eq.f32.partialorder %v1659, 8.507059e+37
    %v1661 = vand.u32 %v1639, 2147483648
    %v1662 = vor.u32 1.1754944e-38, %v1661
    %v1663 = vsel %vm1660, %v1662, %v1658
    %v1664 = vmul.f32 %v1525, %v1663
    %v1665 = vrcp.pop %v1642
    %v1666 = vmul.f32 %v1642, %v1665
    %v1667 = vsub.f32 1.0, %v1666
    %v1668 = vmul.f32 %v1665, %v1667
    %v1669 = vadd.f32 %v1665, %v1668
    %vm1670 = vweird.f32 %v1642
    %vm1671 = vweird.f32 %v1665
    %vm1672 = vmor %vm1670, %vm1671
    %v1673 = vsel %vm1672, %v1665, %v1669
    %v1674 = vand.u32 2147483647, %v1642
    %vm1675 = vcmp.eq.f32.partialorder %v1674, 8.507059e+37
    %v1676 = vand.u32 %v1642, 2147483648
    %v1677 = vor.u32 1.1754944e-38, %v1676
    %v1678 = vsel %vm1675, %v1677, %v1673
    %v1679 = vmul.f32 %v1527, %v1678
    %v1680 = vrcp.pop %v1645
    %v1681 = vmul.f32 %v1645, %v1680
    %v1682 = vsub.f32 1.0, %v1681
    %v1683 = vmul.f32 %v1680, %v1682
    %v1684 = vadd.f32 %v1680, %v1683
    %vm1685 = vweird.f32 %v1645
    %vm1686 = vweird.f32 %v1680
    %vm1687 = vmor %vm1685, %vm1686
    %v1688 = vsel %vm1687, %v1680, %v1684
    %v1689 = vand.u32 2147483647, %v1645
    %vm1690 = vcmp.eq.f32.partialorder %v1689, 8.507059e+37
    %v1691 = vand.u32 %v1645, 2147483648
    %v1692 = vor.u32 1.1754944e-38, %v1691
    %v1693 = vsel %vm1690, %v1692, %v1688
    %v1694 = vmul.f32 %v1529, %v1693
    %v1695 = vrcp.pop %v1648
    %v1696 = vmul.f32 %v1648, %v1695
    %v1697 = vsub.f32 1.0, %v1696
    %v1698 = vmul.f32 %v1695, %v1697
    %v1699 = vadd.f32 %v1695, %v1698
    %vm1700 = vweird.f32 %v1648
    %vm1701 = vweird.f32 %v1695
    %vm1702 = vmor %vm1700, %vm1701
    %v1703 = vsel %vm1702, %v1695, %v1699
    %v1704 = vand.u32 2147483647, %v1648
    %vm1705 = vcmp.eq.f32.partialorder %v1704, 8.507059e+37
    %v1706 = vand.u32 %v1648, 2147483648
    %v1707 = vor.u32 1.1754944e-38, %v1706
    %v1708 = vsel %vm1705, %v1707, %v1703
    %v1709 = vmul.f32 %v1531, %v1708
    %v1710 = vld [vmem:[%s6] sm:$0xff]
    %v1711 = vld [vmem:[%s6 + $0x8] sm:$0xff]
    %v1712 = vld [vmem:[%s6 + $0x10] sm:$0xff]
    %v1713 = vld [vmem:[%s6 + $0x18] sm:$0xff]
    %1714 = vmatpush.msra.mxu0 0.0
    %1715 = vmatpush.msra.mxu0 0.0
    %1716 = vmatpush.msra.mxu0 0.0
    %1717 = vmatpush.msra.mxu0 0.0
    %1718 = vmatpush.msra.mxu0 0.0
    %1719 = vmatpush.msra.mxu0 0.0
    %1720 = vmatpush.msra.mxu0 0.0
    %1721 = vmatpush.msra.mxu0 0.0
    %1722 = vmatpush.msra.mxu0 0.0
    %1723 = vmatpush.msra.mxu0 0.0
    %1724 = vmatpush.msra.mxu0 0.0
    %1725 = vmatpush.msra.mxu0 0.0
    %1726 = vmatpush.msra.mxu0 %v1713
    %1727 = vmatpush.msra.mxu0 %v1712
    %1728 = vmatpush.msra.mxu0 %v1711
    %1729 = vmatpush.msra.mxu0 %v1710
    %1730 = vmatmul.f32.gmra.mxu0 %v1438
    %v1731 = vpop.f32.mrf.mxu0
    %v1732 = vadd.f32 0.0, %v1731
    %1733 = vmatmul.f32.gmra.mxu0 %v1441
    %v1734 = vpop.f32.mrf.mxu0
    %v1735 = vadd.f32 0.0, %v1734
    %1736 = vmatmul.f32.gmra.mxu0 %v1444
    %v1737 = vpop.f32.mrf.mxu0
    %v1738 = vadd.f32 0.0, %v1737
    %1739 = vmatmul.f32.gmra.mxu0 %v1447
    %v1740 = vpop.f32.mrf.mxu0
    %v1741 = vadd.f32 0.0, %v1740
    %1742 = vdwg.mxu0
    %1744 = vset.pattern.permute.xlu0 0
    %1745 = vperm.xlu0 %1744, %v1664
    %v1746 = vpop.permute.xlu0 %1745
    %1749 = vset.pattern.permute.xlu0 0
    %1750 = vperm.xlu0 %1749, %v1679
    %v1751 = vpop.permute.xlu0 %1750
    %1754 = vset.pattern.permute.xlu0 0
    %1755 = vperm.xlu0 %1754, %v1694
    %v1756 = vpop.permute.xlu0 %1755
    %1759 = vset.pattern.permute.xlu0 0
    %1760 = vperm.xlu0 %1759, %v1709
    %v1761 = vpop.permute.xlu0 %1760
    %v1763 = vmul.f32 %v1746, %v1732
    %v1764 = vmul.f32 %v1751, %v1735
    %v1765 = vmul.f32 %v1756, %v1738
    %v1766 = vmul.f32 %v1761, %v1741
    %v1767 = vadd.f32 %v1763, 0.0
    %v1768 = vadd.f32 %v1764, 0.0
    %v1769 = vadd.f32 %v1765, 0.0
    %v1770 = vadd.f32 %v1766, 0.0
    %1771 = vset.pattern.permute.xlu0 1
    %1772 = vperm.xlu0 %1771, %v1664
    %v1773 = vpop.permute.xlu0 %1772
    %1775 = vset.pattern.permute.xlu0 1
    %1776 = vperm.xlu0 %1775, %v1679
    %v1777 = vpop.permute.xlu0 %1776
    %1779 = vset.pattern.permute.xlu0 1
    %1780 = vperm.xlu0 %1779, %v1694
    %v1781 = vpop.permute.xlu0 %1780
    %1783 = vset.pattern.permute.xlu0 1
    %1784 = vperm.xlu0 %1783, %v1709
    %v1785 = vpop.permute.xlu0 %1784
    %v1787 = vmul.f32 %v1773, %v1732
    %v1788 = vmul.f32 %v1777, %v1735
    %v1789 = vmul.f32 %v1781, %v1738
    %v1790 = vmul.f32 %v1785, %v1741
    %1795 = vrot.lane.b32.xlu0 %v1787, 120
    %v1796 = vpop.permute.xlu0 %1795
    %1797 = vrot.lane.b32.xlu0 %v1788, 120
    %v1798 = vpop.permute.xlu0 %1797
    %1799 = vrot.lane.b32.xlu0 %v1789, 120
    %v1800 = vpop.permute.xlu0 %1799
    %1801 = vrot.lane.b32.xlu0 %v1790, 120
    %v1802 = vpop.permute.xlu0 %1801
    %v1807 = vadd.f32 %v1767, %v1796
    %v1808 = vadd.f32 %v1768, %v1798
    %v1809 = vadd.f32 %v1769, %v1800
    %v1810 = vadd.f32 %v1770, %v1802
    %1811 = vset.pattern.permute.xlu0 2
    %1812 = vperm.xlu0 %1811, %v1664
    %v1813 = vpop.permute.xlu0 %1812
    %1815 = vset.pattern.permute.xlu0 2
    %1816 = vperm.xlu0 %1815, %v1679
    %v1817 = vpop.permute.xlu0 %1816
    %1819 = vset.pattern.permute.xlu0 2
    %1820 = vperm.xlu0 %1819, %v1694
    %v1821 = vpop.permute.xlu0 %1820
    %1823 = vset.pattern.permute.xlu0 2
    %1824 = vperm.xlu0 %1823, %v1709
    %v1825 = vpop.permute.xlu0 %1824
    %v1827 = vmul.f32 %v1813, %v1732
    %v1828 = vmul.f32 %v1817, %v1735
    %v1829 = vmul.f32 %v1821, %v1738
    %v1830 = vmul.f32 %v1825, %v1741
    %1835 = vrot.lane.b32.xlu0 %v1827, 112
    %v1836 = vpop.permute.xlu0 %1835
    %1837 = vrot.lane.b32.xlu0 %v1828, 112
    %v1838 = vpop.permute.xlu0 %1837
    %1839 = vrot.lane.b32.xlu0 %v1829, 112
    %v1840 = vpop.permute.xlu0 %1839
    %1841 = vrot.lane.b32.xlu0 %v1830, 112
    %v1842 = vpop.permute.xlu0 %1841
    %v1847 = vadd.f32 %v1807, %v1836
    %v1848 = vadd.f32 %v1808, %v1838
    %v1849 = vadd.f32 %v1809, %v1840
    %v1850 = vadd.f32 %v1810, %v1842
    %1851 = vset.pattern.permute.xlu0 3
    %1852 = vperm.xlu0 %1851, %v1664
    %v1853 = vpop.permute.xlu0 %1852
    %1855 = vset.pattern.permute.xlu0 3
    %1856 = vperm.xlu0 %1855, %v1679
    %v1857 = vpop.permute.xlu0 %1856
    %1859 = vset.pattern.permute.xlu0 3
    %1860 = vperm.xlu0 %1859, %v1694
    %v1861 = vpop.permute.xlu0 %1860
    %1863 = vset.pattern.permute.xlu0 3
    %1864 = vperm.xlu0 %1863, %v1709
    %v1865 = vpop.permute.xlu0 %1864
    %v1867 = vmul.f32 %v1853, %v1732
    %v1868 = vmul.f32 %v1857, %v1735
    %v1869 = vmul.f32 %v1861, %v1738
    %v1870 = vmul.f32 %v1865, %v1741
    %1875 = vrot.lane.b32.xlu0 %v1867, 104
    %v1876 = vpop.permute.xlu0 %1875
    %1877 = vrot.lane.b32.xlu0 %v1868, 104
    %v1878 = vpop.permute.xlu0 %1877
    %1879 = vrot.lane.b32.xlu0 %v1869, 104
    %v1880 = vpop.permute.xlu0 %1879
    %1881 = vrot.lane.b32.xlu0 %v1870, 104
    %v1882 = vpop.permute.xlu0 %1881
    %v1887 = vadd.f32 %v1847, %v1876
    %v1888 = vadd.f32 %v1848, %v1878
    %v1889 = vadd.f32 %v1849, %v1880
    %v1890 = vadd.f32 %v1850, %v1882
    %vm1891 = vcmp.eq.s32.totalorder %v1533, %v1596
    %v1892 = vsel %vm1891, 1, 0
    %v1893 = vcvt.s32.f32 %v1892
    %v1894 = vld [vmem:[%s7] sm:$0x1]
    %v1896 = vperm.slane %v1894, 0
    %v1899 = vsel %vm307, %v1893, 0
    %1901 = vmatpush.msra.mxu0 0.0
    %1902 = vmatpush.msra.mxu0 0.0
    %1903 = vmatpush.msra.mxu0 0.0
    %1904 = vmatpush.msra.mxu0 0.0
    %1905 = vmatpush.msra.mxu0 0.0
    %1906 = vmatpush.msra.mxu0 0.0
    %1907 = vmatpush.msra.mxu0 0.0
    %1908 = vmatpush.msra.mxu0 0.0
    %1909 = vmatpush.msra.mxu0 0.0
    %1910 = vmatpush.msra.mxu0 0.0
    %1911 = vmatpush.msra.mxu0 0.0
    %1912 = vmatpush.msra.mxu0 0.0
    %1913 = vmatpush.msra.mxu0 %v1890
    %1914 = vmatpush.msra.mxu0 %v1889
    %1915 = vmatpush.msra.mxu0 %v1888
    %1916 = vmatpush.msra.mxu0 %v1887
    %1917 = vmatmul.f32.gmra.mxu0 %v1899
    %v1918 = vpop.f32.mrf.mxu0
    %v1919 = vadd.f32 %v1896, %v1918
    %1920 = vdwg.mxu0
    %vm1921 = vcmask 58368
    %1922 = vst.msk [vmem:[#allocation2] sm:$0x3] %vm1921, %v1919
    // Predicated region
    $region34: #{forward_pallas.1} parent=1 // pred_check
      _
    $region35: #{forward_pallas.1} parent=1 // pred_check_branch
      %1924 = sbr.rel (0) target = $region37
    $region36: #{forward_pallas.1} parent=1 // pred_region
      %1926 = vsyncadd [#allocation3], 0
      %s1928 = sshll.u32 [#allocation2], 4
      %s1929 = int_to_ptr.vmem [resolvable:$true] %s1928
      %s1930 = sshll.u32 %s8, 4
      %s1931 = int_to_ptr.hbm [resolvable:$true] %s1930
      %1933 = dma.vmem_to_hbm [thread:$0]  %s1929, 32, %s1931, [#allocation3]
    $region37: #{forward_pallas.1} parent=1 // pred_fallthru
      _
    // Predicated region
    $region38: #{forward_pallas.1} parent=1 // pred_check
      _
    $region39: #{forward_pallas.1} parent=1 // pred_check_branch
      %1935 = sbr.rel (0) target = $region41
    $region40: #{forward_pallas.1} parent=1 // pred_region
      %1937 = dma.done [#allocation3], 32
    $region41: #{forward_pallas.1} parent=1 // pred_fallthru
      _
    %1938 = vsyncpa [#allocation3], 1

</llo_original>
